<compile_context>
chip_gen: v7x
topology: tpu7x:2x2x1
jax: 0.10.0
libtpu: 0.0.40
codegen_flags: <defaults>
</compile_context>

<pallas_src>
import functools

import jax
import jax.numpy as jnp
from jax import lax
from jax.experimental import pallas as pl
from jax.experimental.pallas import tpu as pltpu


def _round_up(x, m):
    return (x + m - 1) // m * m


# --------------------------------------------------------------------------
# Pallas kernel: one (direction, time-chunk) grid step of a bidirectional LSTM.
# Grid axis 0 = direction ("parallel", shards across TCs on v7x);
# grid axis 1 = time chunk ("arbitrary", carries the recurrence).
# --------------------------------------------------------------------------
def _lstm_dir_chunk_kernel(x_ref,            # [1, tT*Bp, E]  chunk (dir-ordered)
                           wih_ref,          # [1, E, Gp]
                           whh_ref,          # [1, H, Gp]
                           b_ref,            # [1, 1, Gp]     (b_ih + b_hh)
                           out_ref,          # [1, Bp, H]
                           h, c,             # scratch [Bp, H]
                           gx,               # scratch [tT*Bp, Gp]
                           *, T, tT, Bp, H):
    d = pl.program_id(0)            # 0 = forward, 1 = backward
    ci = pl.program_id(1)           # time-chunk index
    n_chunks = pl.num_programs(1)

    @pl.when(ci == 0)
    def _init():
        h[...] = jnp.zeros_like(h)
        c[...] = jnp.zeros_like(c)

    # ---- hoisted input projection: one GEMM for the whole chunk (+ bias)
    gx[...] = (jnp.dot(x_ref[0], wih_ref[0], preferred_element_type=jnp.float32)
               + b_ref[0])

    whh = whh_ref[0]                # hoisted weight read (no per-step reload)

    # global chunk index of the data in x_ref (backward reads reversed chunks):
    #   d == 0 -> ci ;  d == 1 -> n_chunks - 1 - ci
    chunk_global = ci + d * (n_chunks - 1 - 2 * ci)

    def step(t, carry):
        # forward walks local times 0..tT-1, backward walks tT-1..0
        local_t = t + d * (tT - 1 - 2 * t)
        global_t = chunk_global * tT + local_t
        off = pl.multiple_of(local_t * Bp, Bp)

        gates = gx[pl.ds(off, Bp), :] + jnp.dot(
            h[...], whh, preferred_element_type=jnp.float32)

        # PyTorch gate order i | f | g | o, packed contiguously at width H
        i_g = jax.nn.sigmoid(gates[:, 0 * H:1 * H])
        f_g = jax.nn.sigmoid(gates[:, 1 * H:2 * H])
        g_g = jnp.tanh(gates[:, 2 * H:3 * H])
        o_g = jax.nn.sigmoid(gates[:, 3 * H:4 * H])
        c_new = f_g * c[...] + i_g * g_g
        h_new = o_g * jnp.tanh(c_new)

        # time-padded steps (global_t >= T) are identity -> masking keeps tT
        # fixed for prime/odd T instead of degenerating to tT = 1.
        valid = global_t < T
        h[...] = jnp.where(valid, h_new, h[...])
        c[...] = jnp.where(valid, c_new, c[...])
        return carry

    # fully unroll the serial recurrence inside the chunk
    lax.fori_loop(0, tT, step, 0, unroll=True)

    @pl.when(ci == n_chunks - 1)
    def _finalize():
        out_ref[0, :, :] = h[...]


# --------------------------------------------------------------------------
# One-time parameter preparation (transpose, gate padding, bias combine).
# Call once and reuse across forward calls.
# --------------------------------------------------------------------------
def prepare_params(params, hidden_dim):
    H = hidden_dim
    Gp = _round_up(4 * H, 128)      # gates packed contiguously, padded once

    def prep_dir(sfx):
        wih_t = params[f"w_ih_{sfx}"].astype(jnp.float32).T          # [E, 4H]
        whh_t = params[f"w_hh_{sfx}"].astype(jnp.float32).T          # [H, 4H]
        b = (params[f"b_ih_{sfx}"]
             + params[f"b_hh_{sfx}"]).astype(jnp.float32)[None, :]   # [1, 4H]
        pad = ((0, 0), (0, Gp - 4 * H))
        return jnp.pad(wih_t, pad), jnp.pad(whh_t, pad), jnp.pad(b, pad)

    wih_f, whh_f, b_f = prep_dir("f")
    wih_b, whh_b, b_b = prep_dir("b")
    return {
        "embedding": params["embedding"].astype(jnp.float32),
        "wih": jnp.stack([wih_f, wih_b]),     # [2, E, Gp]
        "whh": jnp.stack([whh_f, whh_b]),     # [2, H, Gp]
        "b": jnp.stack([b_f, b_b]),           # [2, 1, Gp]
        "H": H, "Gp": Gp,
    }


# --------------------------------------------------------------------------
# Full module forward (glue in plain JAX: embedding gather, transpose, padding)
# --------------------------------------------------------------------------
def lstm_text_encoder_forward(tokens, prep, *, time_chunk=8):
    """tokens: [B, T] int32 -> [B, 2*hidden_dim] f32 (lengths=None path)."""
    H, Gp = prep["H"], prep["Gp"]
    B, T = tokens.shape
    E = prep["embedding"].shape[1]
    Bp = _round_up(max(B, 8), 8)

    embedded = jnp.take(prep["embedding"], tokens, axis=0)            # [B, T, E]
    # nn.Dropout in eval mode is identity (deterministic inference path).
    x = jnp.transpose(embedded, (1, 0, 2)).astype(jnp.float32)        # [T, B, E]
    if Bp != B:
        x = jnp.pad(x, ((0, 0), (0, Bp - B), (0, 0)))                 # [T, Bp, E]

    # ---- generation-aware VMEM budget; derive time-chunk size from it
    try:
        vmem_cap = int(pltpu.get_tpu_info().vmem_capacity_bytes)
    except Exception:
        vmem_cap = 64 * 1024 * 1024          # v7x per-TC VMEM as a safe floor
    budget = int(0.75 * vmem_cap)
    f32 = 4

    def vmem_need(tt):
        return f32 * (
            2 * tt * Bp * E                  # x chunk (double-buffered)
            + 2 * (E * Gp + H * Gp + Gp)     # per-direction weights/bias (dbl-buf)
            + 2 * Bp * H                     # output block
            + 2 * Bp * H                     # h, c scratch
            + tt * Bp * Gp                   # gx scratch
        )

    tT = max(1, min(time_chunk, T))
    while tT > 1 and vmem_need(tT) > budget:
        tT = max(1, tT // 2)

    # pad T up to a multiple of tT; padded steps are masked inside the kernel
    Tpad = _round_up(T, tT)
    if Tpad != T:
        x = jnp.pad(x, ((0, Tpad - T), (0, 0), (0, 0)))
    n_chunks = Tpad // tT
    x_chunks = x.reshape(n_chunks, tT * Bp, E)   # contiguous row-major chunks

    vmem_limit = int(min(vmem_cap, max(2 * vmem_need(tT), 32 * 1024 * 1024)))

    kernel = functools.partial(_lstm_dir_chunk_kernel, T=T, tT=tT, Bp=Bp, H=H)
    nc1 = n_chunks - 1

    out = pl.pallas_call(
        kernel,
        out_shape=jax.ShapeDtypeStruct((2, Bp, H), jnp.float32),
        grid_spec=pltpu.PrefetchScalarGridSpec(
            num_scalar_prefetch=0,
            grid=(2, n_chunks),
            in_specs=[
                # forward (d=0) reads chunk ci; backward (d=1) reads nc1-ci
                pl.BlockSpec((1, tT * Bp, E),
                             lambda d, ci: (ci + d * (nc1 - 2 * ci), 0, 0)),
                pl.BlockSpec((1, E, Gp), lambda d, ci: (d, 0, 0)),
                pl.BlockSpec((1, H, Gp), lambda d, ci: (d, 0, 0)),
                pl.BlockSpec((1, 1, Gp), lambda d, ci: (d, 0, 0)),
            ],
            out_specs=pl.BlockSpec((1, Bp, H), lambda d, ci: (d, 0, 0)),
            scratch_shapes=[
                pltpu.VMEM((Bp, H), jnp.float32),        # h
                pltpu.VMEM((Bp, H), jnp.float32),        # c
                pltpu.VMEM((tT * Bp, Gp), jnp.float32),  # gx (chunk projection)
            ],
        ),
        compiler_params=pltpu.CompilerParams(
            # direction axis is independent -> shard across v7x's 2 TensorCores;
            # time axis carries the recurrence -> sequential.
            dimension_semantics=("parallel", "arbitrary"),
            vmem_limit_bytes=vmem_limit,
        ),
    )(x_chunks, prep["wih"], prep["whh"], prep["b"])

    # torch.cat([hidden[-2], hidden[-1]], dim=1): strip batch padding
    return jnp.concatenate([out[0, :B, :], out[1, :B, :]], axis=1)


# --------------------------------------------------------------------------
# Pure-JAX reference for the correctness check
# --------------------------------------------------------------------------
def _lstm_dir_ref(embedded, w_ih, w_hh, b_ih, b_hh, reverse):
    B = embedded.shape[0]
    H = w_hh.shape[1]

    def step(carry, x_t):
        h, c = carry
        gates = x_t @ w_ih.T + h @ w_hh.T + b_ih + b_hh
        i, f, g, o = jnp.split(gates, 4, axis=1)
        c = jax.nn.sigmoid(f) * c + jax.nn.sigmoid(i) * jnp.tanh(g)
        h = jax.nn.sigmoid(o) * jnp.tanh(c)
        return (h, c), None

    xs = jnp.transpose(embedded, (1, 0, 2))
    if reverse:
        xs = xs[::-1]
    (h, _), _ = lax.scan(step, (jnp.zeros((B, H)), jnp.zeros((B, H))), xs)
    return h


def reference_forward(tokens, params, hidden_dim):
    embedded = jnp.take(params["embedding"], tokens, axis=0).astype(jnp.float32)
    h_f = _lstm_dir_ref(embedded, params["w_ih_f"], params["w_hh_f"],
                        params["b_ih_f"], params["b_hh_f"], reverse=False)
    h_b = _lstm_dir_ref(embedded, params["w_ih_b"], params["w_hh_b"],
                        params["b_ih_b"], params["b_hh_b"], reverse=True)
    return jnp.concatenate([h_f, h_b], axis=1)


# --------------------------------------------------------------------------
# Deterministic parameter init (shapes from the module __init__)
# --------------------------------------------------------------------------
def init_params(key, vocab_size, embed_dim, hidden_dim):
    ks = jax.random.split(key, 9)
    k_scale = 1.0 / jnp.sqrt(hidden_dim)

    emb = jax.random.normal(ks[0], (vocab_size, embed_dim), jnp.float32)
    emb = emb.at[0].set(0.0)   # padding_idx=0

    def u(k, shape):
        return jax.random.uniform(k, shape, jnp.float32, -k_scale, k_scale)

    return {
        "embedding": emb,
        "w_ih_f": u(ks[1], (4 * hidden_dim, embed_dim)),
        "w_hh_f": u(ks[2], (4 * hidden_dim, hidden_dim)),
        "b_ih_f": u(ks[3], (4 * hidden_dim,)),
        "b_hh_f": u(ks[4], (4 * hidden_dim,)),
        "w_ih_b": u(ks[5], (4 * hidden_dim, embed_dim)),
        "w_hh_b": u(ks[6], (4 * hidden_dim, hidden_dim)),
        "b_ih_b": u(ks[7], (4 * hidden_dim,)),
        "b_hh_b": u(ks[8], (4 * hidden_dim,)),
    }


if __name__ == "__main__":
    VOCAB, EMBED, HIDDEN = 100, 32, 32

    key = jax.random.PRNGKey(0)
    k_params, k_tok1, k_tok2 = jax.random.split(key, 3)
    params = init_params(k_params, VOCAB, EMBED, HIDDEN)
    prep = prepare_params(params, HIDDEN)            # one-time weight prep

    # Case 1: B=2, T=16 (T divides the time chunk)
    tokens = jax.random.randint(k_tok1, (2, 16), 0, VOCAB, dtype=jnp.int32)
    out = jax.block_until_ready(
        lstm_text_encoder_forward(tokens, prep, time_chunk=8))
    ref = jax.block_until_ready(reference_forward(tokens, params, HIDDEN))
    assert out.shape == (2, 2 * HIDDEN)
    assert jnp.allclose(out, ref, atol=1e-4, rtol=1e-4), (out, ref)

    # Case 2: awkward T (prime) + odd B -> exercises time-pad masking + batch pad
    tokens2 = jax.random.randint(k_tok2, (3, 13), 0, VOCAB, dtype=jnp.int32)
    out2 = jax.block_until_ready(
        lstm_text_encoder_forward(tokens2, prep, time_chunk=8))
    ref2 = jax.block_until_ready(reference_forward(tokens2, params, HIDDEN))
    assert out2.shape == (3, 2 * HIDDEN)
    assert jnp.allclose(out2, ref2, atol=1e-4, rtol=1e-4), (out2, ref2)

    print("KERNEL_OK")
</pallas_src>

<mosaic_0001>
module attributes {stable_mosaic.version = 11 : i64} {
  func.func @_lstm_dir_chunk_kernel(%arg0: i32, %arg1: i32, %arg2: memref<1x64x32xf32, #tpu.memory_space<vmem>>, %arg3: memref<1x32x128xf32, #tpu.memory_space<vmem>>, %arg4: memref<1x32x128xf32, #tpu.memory_space<vmem>>, %arg5: memref<1x1x128xf32, #tpu.memory_space<vmem>>, %arg6: memref<1x8x32xf32, #tpu.memory_space<vmem>>, %arg7: memref<8x32xf32, #tpu.memory_space<vmem>>, %arg8: memref<8x32xf32, #tpu.memory_space<vmem>>, %arg9: memref<64x128xf32, #tpu.memory_space<vmem>>) attributes {dimension_semantics = [#tpu.dimension_semantics<parallel>, #tpu.dimension_semantics<arbitrary>], iteration_bounds = array<i64: 2, 2>, scalar_prefetch = 0 : i64, scratch_operands = 3 : i64, tpu.core_type = #tpu.core_type<tc>, window_params = [{transform_indices = @transform_0, window_bounds = array<i64: 1, 64, 32>}, {transform_indices = @transform_1, window_bounds = array<i64: 1, 32, 128>}, {transform_indices = @transform_2, window_bounds = array<i64: 1, 32, 128>}, {transform_indices = @transform_3, window_bounds = array<i64: 1, 1, 128>}, {transform_indices = @transform_4, window_bounds = array<i64: 1, 8, 32>}]} {
    %c0_i32 = arith.constant 0 : i32
    %0 = arith.cmpi eq, %arg1, %c0_i32 : i32
    %1 = arith.extui %0 : i1 to i32
    %c0_i32_0 = arith.constant 0 : i32
    %2 = arith.cmpi ne, %1, %c0_i32_0 : i32
    scf.if %2 {
      %cst_194 = arith.constant 0.000000e+00 : f32
      %390 = vector.broadcast %cst_194 : f32 to vector<8x32xf32>
      %c0_195 = arith.constant 0 : index
      %c0_196 = arith.constant 0 : index
      %391 = vector.load %arg7[%c0_195, %c0_196] : memref<8x32xf32, #tpu.memory_space<vmem>>, vector<8x32xf32>
      tpu.vector_store %arg7[%c0_195, %c0_196], %390 {strides = array<i32>} : memref<8x32xf32, #tpu.memory_space<vmem>>, vector<8x32xf32>,
      %cst_197 = arith.constant 0.000000e+00 : f32
      %392 = vector.broadcast %cst_197 : f32 to vector<8x32xf32>
      %c0_198 = arith.constant 0 : index
      %c0_199 = arith.constant 0 : index
      %393 = vector.load %arg8[%c0_198, %c0_199] : memref<8x32xf32, #tpu.memory_space<vmem>>, vector<8x32xf32>
      tpu.vector_store %arg8[%c0_198, %c0_199], %392 {strides = array<i32>} : memref<8x32xf32, #tpu.memory_space<vmem>>, vector<8x32xf32>,
    } else {
    }
    %c0 = arith.constant 0 : index
    %c0_1 = arith.constant 0 : index
    %c0_2 = arith.constant 0 : index
    %3 = vector.load %arg2[%c0, %c0_1, %c0_2] : memref<1x64x32xf32, #tpu.memory_space<vmem>>, vector<1x64x32xf32>
    %4 = vector.shape_cast %3 : vector<1x64x32xf32> to vector<64x32xf32>
    %c0_3 = arith.constant 0 : index
    %c0_4 = arith.constant 0 : index
    %c0_5 = arith.constant 0 : index
    %5 = vector.load %arg3[%c0_3, %c0_4, %c0_5] : memref<1x32x128xf32, #tpu.memory_space<vmem>>, vector<1x32x128xf32>
    %6 = vector.shape_cast %5 : vector<1x32x128xf32> to vector<32x128xf32>
    %cst = arith.constant dense<0.000000e+00> : vector<64x128xf32>
    %7 = tpu.matmul %4, %6, %cst {dimension_numbers = #tpu.dot_dimension_numbers<[1], [0], [0], [1], [0, 0, 1, 1], [], []>} : vector<64x32xf32>, vector<32x128xf32>, vector<64x128xf32> -> vector<64x128xf32>
    %c0_6 = arith.constant 0 : index
    %c0_7 = arith.constant 0 : index
    %c0_8 = arith.constant 0 : index
    %8 = vector.load %arg5[%c0_6, %c0_7, %c0_8] : memref<1x1x128xf32, #tpu.memory_space<vmem>>, vector<1x1x128xf32>
    %9 = vector.shape_cast %8 : vector<1x1x128xf32> to vector<1x128xf32>
    %10 = vector.broadcast %9 : vector<1x128xf32> to vector<64x128xf32>
    %11 = arith.addf %7, %10 : vector<64x128xf32>
    %c0_9 = arith.constant 0 : index
    %c0_10 = arith.constant 0 : index
    %12 = vector.load %arg9[%c0_9, %c0_10] : memref<64x128xf32, #tpu.memory_space<vmem>>, vector<64x128xf32>
    tpu.vector_store %arg9[%c0_9, %c0_10], %11 {strides = array<i32>} : memref<64x128xf32, #tpu.memory_space<vmem>>, vector<64x128xf32>,
    %c0_11 = arith.constant 0 : index
    %c0_12 = arith.constant 0 : index
    %c0_13 = arith.constant 0 : index
    %13 = vector.load %arg4[%c0_11, %c0_12, %c0_13] : memref<1x32x128xf32, #tpu.memory_space<vmem>>, vector<1x32x128xf32>
    %14 = vector.shape_cast %13 : vector<1x32x128xf32> to vector<32x128xf32>
    %c2_i32 = arith.constant 2 : i32
    %15 = arith.muli %c2_i32, %arg1 : i32
    %c1_i32 = arith.constant 1 : i32
    %16 = arith.subi %c1_i32, %15 : i32
    %17 = arith.muli %arg0, %16 : i32
    %18 = arith.addi %arg1, %17 : i32
    %c0_i32_14 = arith.constant 0 : i32
    %c2_i32_15 = arith.constant 2 : i32
    %19 = arith.muli %c2_i32_15, %c0_i32_14 : i32
    %c7_i32 = arith.constant 7 : i32
    %20 = arith.subi %c7_i32, %19 : i32
    %21 = arith.muli %arg0, %20 : i32
    %22 = arith.addi %c0_i32_14, %21 : i32
    %c8_i32 = arith.constant 8 : i32
    %23 = arith.muli %18, %c8_i32 : i32
    %24 = arith.addi %23, %22 : i32
    %c8_i32_16 = arith.constant 8 : i32
    %25 = arith.muli %22, %c8_i32_16 : i32
    %26 = tpu.assume_multiple %25, 8 : i32
    %27 = arith.index_cast %26 : i32 to index
    %c0_17 = arith.constant 0 : index
    %28 = vector.load %arg9[%27, %c0_17] : memref<64x128xf32, #tpu.memory_space<vmem>>, vector<8x128xf32>
    %c0_18 = arith.constant 0 : index
    %c0_19 = arith.constant 0 : index
    %29 = vector.load %arg7[%c0_18, %c0_19] : memref<8x32xf32, #tpu.memory_space<vmem>>, vector<8x32xf32>
    %cst_20 = arith.constant dense<0.000000e+00> : vector<8x128xf32>
    %30 = tpu.matmul %29, %14, %cst_20 {dimension_numbers = #tpu.dot_dimension_numbers<[1], [0], [0], [1], [0, 0, 1, 1], [], []>} : vector<8x32xf32>, vector<32x128xf32>, vector<8x128xf32> -> vector<8x128xf32>
    %31 = arith.addf %28, %30 : vector<8x128xf32>
    %32 = vector.extract_strided_slice %31 {offsets = [0, 0], sizes = [8, 32], strides = [1, 1]} : vector<8x128xf32> to vector<8x32xf32>
    %33 = arith.negf %32 : vector<8x32xf32>
    %34 = math.exp %33 : vector<8x32xf32>
    %cst_21 = arith.constant 1.000000e+00 : f32
    %35 = vector.broadcast %cst_21 : f32 to vector<8x32xf32>
    %36 = arith.addf %35, %34 : vector<8x32xf32>
    %37 = arith.divf %35, %36 : vector<8x32xf32>
    %38 = vector.extract_strided_slice %31 {offsets = [0, 32], sizes = [8, 32], strides = [1, 1]} : vector<8x128xf32> to vector<8x32xf32>
    %39 = arith.negf %38 : vector<8x32xf32>
    %40 = math.exp %39 : vector<8x32xf32>
    %cst_22 = arith.constant 1.000000e+00 : f32
    %41 = vector.broadcast %cst_22 : f32 to vector<8x32xf32>
    %42 = arith.addf %41, %40 : vector<8x32xf32>
    %43 = arith.divf %41, %42 : vector<8x32xf32>
    %44 = vector.extract_strided_slice %31 {offsets = [0, 64], sizes = [8, 32], strides = [1, 1]} : vector<8x128xf32> to vector<8x32xf32>
    %45 = math.tanh %44 : vector<8x32xf32>
    %46 = vector.extract_strided_slice %31 {offsets = [0, 96], sizes = [8, 32], strides = [1, 1]} : vector<8x128xf32> to vector<8x32xf32>
    %47 = arith.negf %46 : vector<8x32xf32>
    %48 = math.exp %47 : vector<8x32xf32>
    %cst_23 = arith.constant 1.000000e+00 : f32
    %49 = vector.broadcast %cst_23 : f32 to vector<8x32xf32>
    %50 = arith.addf %49, %48 : vector<8x32xf32>
    %51 = arith.divf %49, %50 : vector<8x32xf32>
    %c0_24 = arith.constant 0 : index
    %c0_25 = arith.constant 0 : index
    %52 = vector.load %arg8[%c0_24, %c0_25] : memref<8x32xf32, #tpu.memory_space<vmem>>, vector<8x32xf32>
    %53 = arith.mulf %43, %52 : vector<8x32xf32>
    %54 = arith.mulf %37, %45 : vector<8x32xf32>
    %55 = arith.addf %53, %54 : vector<8x32xf32>
    %56 = math.tanh %55 : vector<8x32xf32>
    %57 = arith.mulf %51, %56 : vector<8x32xf32>
    %c16_i32 = arith.constant 16 : i32
    %58 = arith.cmpi slt, %24, %c16_i32 : i32
    %c0_26 = arith.constant 0 : index
    %c0_27 = arith.constant 0 : index
    %59 = vector.load %arg7[%c0_26, %c0_27] : memref<8x32xf32, #tpu.memory_space<vmem>>, vector<8x32xf32>
    %60 = arith.select %58, %57, %59 : vector<8x32xf32>
    %c0_28 = arith.constant 0 : index
    %c0_29 = arith.constant 0 : index
    %61 = vector.load %arg7[%c0_28, %c0_29] : memref<8x32xf32, #tpu.memory_space<vmem>>, vector<8x32xf32>
    tpu.vector_store %arg7[%c0_28, %c0_29], %60 {strides = array<i32>} : memref<8x32xf32, #tpu.memory_space<vmem>>, vector<8x32xf32>,
    %c0_30 = arith.constant 0 : index
    %c0_31 = arith.constant 0 : index
    %62 = vector.load %arg8[%c0_30, %c0_31] : memref<8x32xf32, #tpu.memory_space<vmem>>, vector<8x32xf32>
    %63 = arith.select %58, %55, %62 : vector<8x32xf32>
    %c0_32 = arith.constant 0 : index
    %c0_33 = arith.constant 0 : index
    %64 = vector.load %arg8[%c0_32, %c0_33] : memref<8x32xf32, #tpu.memory_space<vmem>>, vector<8x32xf32>
    tpu.vector_store %arg8[%c0_32, %c0_33], %63 {strides = array<i32>} : memref<8x32xf32, #tpu.memory_space<vmem>>, vector<8x32xf32>,
    %c1_i32_34 = arith.constant 1 : i32
    %c2_i32_35 = arith.constant 2 : i32
    %65 = arith.muli %c2_i32_35, %c1_i32_34 : i32
    %c7_i32_36 = arith.constant 7 : i32
    %66 = arith.subi %c7_i32_36, %65 : i32
    %67 = arith.muli %arg0, %66 : i32
    %68 = arith.addi %c1_i32_34, %67 : i32
    %c8_i32_37 = arith.constant 8 : i32
    %69 = arith.muli %18, %c8_i32_37 : i32
    %70 = arith.addi %69, %68 : i32
    %c8_i32_38 = arith.constant 8 : i32
    %71 = arith.muli %68, %c8_i32_38 : i32
    %72 = tpu.assume_multiple %71, 8 : i32
    %73 = arith.index_cast %72 : i32 to index
    %c0_39 = arith.constant 0 : index
    %74 = vector.load %arg9[%73, %c0_39] : memref<64x128xf32, #tpu.memory_space<vmem>>, vector<8x128xf32>
    %c0_40 = arith.constant 0 : index
    %c0_41 = arith.constant 0 : index
    %75 = vector.load %arg7[%c0_40, %c0_41] : memref<8x32xf32, #tpu.memory_space<vmem>>, vector<8x32xf32>
    %cst_42 = arith.constant dense<0.000000e+00> : vector<8x128xf32>
    %76 = tpu.matmul %75, %14, %cst_42 {dimension_numbers = #tpu.dot_dimension_numbers<[1], [0], [0], [1], [0, 0, 1, 1], [], []>} : vector<8x32xf32>, vector<32x128xf32>, vector<8x128xf32> -> vector<8x128xf32>
    %77 = arith.addf %74, %76 : vector<8x128xf32>
    %78 = vector.extract_strided_slice %77 {offsets = [0, 0], sizes = [8, 32], strides = [1, 1]} : vector<8x128xf32> to vector<8x32xf32>
    %79 = arith.negf %78 : vector<8x32xf32>
    %80 = math.exp %79 : vector<8x32xf32>
    %cst_43 = arith.constant 1.000000e+00 : f32
    %81 = vector.broadcast %cst_43 : f32 to vector<8x32xf32>
    %82 = arith.addf %81, %80 : vector<8x32xf32>
    %83 = arith.divf %81, %82 : vector<8x32xf32>
    %84 = vector.extract_strided_slice %77 {offsets = [0, 32], sizes = [8, 32], strides = [1, 1]} : vector<8x128xf32> to vector<8x32xf32>
    %85 = arith.negf %84 : vector<8x32xf32>
    %86 = math.exp %85 : vector<8x32xf32>
    %cst_44 = arith.constant 1.000000e+00 : f32
    %87 = vector.broadcast %cst_44 : f32 to vector<8x32xf32>
    %88 = arith.addf %87, %86 : vector<8x32xf32>
    %89 = arith.divf %87, %88 : vector<8x32xf32>
    %90 = vector.extract_strided_slice %77 {offsets = [0, 64], sizes = [8, 32], strides = [1, 1]} : vector<8x128xf32> to vector<8x32xf32>
    %91 = math.tanh %90 : vector<8x32xf32>
    %92 = vector.extract_strided_slice %77 {offsets = [0, 96], sizes = [8, 32], strides = [1, 1]} : vector<8x128xf32> to vector<8x32xf32>
    %93 = arith.negf %92 : vector<8x32xf32>
    %94 = math.exp %93 : vector<8x32xf32>
    %cst_45 = arith.constant 1.000000e+00 : f32
    %95 = vector.broadcast %cst_45 : f32 to vector<8x32xf32>
    %96 = arith.addf %95, %94 : vector<8x32xf32>
    %97 = arith.divf %95, %96 : vector<8x32xf32>
    %c0_46 = arith.constant 0 : index
    %c0_47 = arith.constant 0 : index
    %98 = vector.load %arg8[%c0_46, %c0_47] : memref<8x32xf32, #tpu.memory_space<vmem>>, vector<8x32xf32>
    %99 = arith.mulf %89, %98 : vector<8x32xf32>
    %100 = arith.mulf %83, %91 : vector<8x32xf32>
    %101 = arith.addf %99, %100 : vector<8x32xf32>
    %102 = math.tanh %101 : vector<8x32xf32>
    %103 = arith.mulf %97, %102 : vector<8x32xf32>
    %c16_i32_48 = arith.constant 16 : i32
    %104 = arith.cmpi slt, %70, %c16_i32_48 : i32
    %c0_49 = arith.constant 0 : index
    %c0_50 = arith.constant 0 : index
    %105 = vector.load %arg7[%c0_49, %c0_50] : memref<8x32xf32, #tpu.memory_space<vmem>>, vector<8x32xf32>
    %106 = arith.select %104, %103, %105 : vector<8x32xf32>
    %c0_51 = arith.constant 0 : index
    %c0_52 = arith.constant 0 : index
    %107 = vector.load %arg7[%c0_51, %c0_52] : memref<8x32xf32, #tpu.memory_space<vmem>>, vector<8x32xf32>
    tpu.vector_store %arg7[%c0_51, %c0_52], %106 {strides = array<i32>} : memref<8x32xf32, #tpu.memory_space<vmem>>, vector<8x32xf32>,
    %c0_53 = arith.constant 0 : index
    %c0_54 = arith.constant 0 : index
    %108 = vector.load %arg8[%c0_53, %c0_54] : memref<8x32xf32, #tpu.memory_space<vmem>>, vector<8x32xf32>
    %109 = arith.select %104, %101, %108 : vector<8x32xf32>
    %c0_55 = arith.constant 0 : index
    %c0_56 = arith.constant 0 : index
    %110 = vector.load %arg8[%c0_55, %c0_56] : memref<8x32xf32, #tpu.memory_space<vmem>>, vector<8x32xf32>
    tpu.vector_store %arg8[%c0_55, %c0_56], %109 {strides = array<i32>} : memref<8x32xf32, #tpu.memory_space<vmem>>, vector<8x32xf32>,
    %c2_i32_57 = arith.constant 2 : i32
    %c2_i32_58 = arith.constant 2 : i32
    %111 = arith.muli %c2_i32_58, %c2_i32_57 : i32
    %c7_i32_59 = arith.constant 7 : i32
    %112 = arith.subi %c7_i32_59, %111 : i32
    %113 = arith.muli %arg0, %112 : i32
    %114 = arith.addi %c2_i32_57, %113 : i32
    %c8_i32_60 = arith.constant 8 : i32
    %115 = arith.muli %18, %c8_i32_60 : i32
    %116 = arith.addi %115, %114 : i32
    %c8_i32_61 = arith.constant 8 : i32
    %117 = arith.muli %114, %c8_i32_61 : i32
    %118 = tpu.assume_multiple %117, 8 : i32
    %119 = arith.index_cast %118 : i32 to index
    %c0_62 = arith.constant 0 : index
    %120 = vector.load %arg9[%119, %c0_62] : memref<64x128xf32, #tpu.memory_space<vmem>>, vector<8x128xf32>
    %c0_63 = arith.constant 0 : index
    %c0_64 = arith.constant 0 : index
    %121 = vector.load %arg7[%c0_63, %c0_64] : memref<8x32xf32, #tpu.memory_space<vmem>>, vector<8x32xf32>
    %cst_65 = arith.constant dense<0.000000e+00> : vector<8x128xf32>
    %122 = tpu.matmul %121, %14, %cst_65 {dimension_numbers = #tpu.dot_dimension_numbers<[1], [0], [0], [1], [0, 0, 1, 1], [], []>} : vector<8x32xf32>, vector<32x128xf32>, vector<8x128xf32> -> vector<8x128xf32>
    %123 = arith.addf %120, %122 : vector<8x128xf32>
    %124 = vector.extract_strided_slice %123 {offsets = [0, 0], sizes = [8, 32], strides = [1, 1]} : vector<8x128xf32> to vector<8x32xf32>
    %125 = arith.negf %124 : vector<8x32xf32>
    %126 = math.exp %125 : vector<8x32xf32>
    %cst_66 = arith.constant 1.000000e+00 : f32
    %127 = vector.broadcast %cst_66 : f32 to vector<8x32xf32>
    %128 = arith.addf %127, %126 : vector<8x32xf32>
    %129 = arith.divf %127, %128 : vector<8x32xf32>
    %130 = vector.extract_strided_slice %123 {offsets = [0, 32], sizes = [8, 32], strides = [1, 1]} : vector<8x128xf32> to vector<8x32xf32>
    %131 = arith.negf %130 : vector<8x32xf32>
    %132 = math.exp %131 : vector<8x32xf32>
    %cst_67 = arith.constant 1.000000e+00 : f32
    %133 = vector.broadcast %cst_67 : f32 to vector<8x32xf32>
    %134 = arith.addf %133, %132 : vector<8x32xf32>
    %135 = arith.divf %133, %134 : vector<8x32xf32>
    %136 = vector.extract_strided_slice %123 {offsets = [0, 64], sizes = [8, 32], strides = [1, 1]} : vector<8x128xf32> to vector<8x32xf32>
    %137 = math.tanh %136 : vector<8x32xf32>
    %138 = vector.extract_strided_slice %123 {offsets = [0, 96], sizes = [8, 32], strides = [1, 1]} : vector<8x128xf32> to vector<8x32xf32>
    %139 = arith.negf %138 : vector<8x32xf32>
    %140 = math.exp %139 : vector<8x32xf32>
    %cst_68 = arith.constant 1.000000e+00 : f32
    %141 = vector.broadcast %cst_68 : f32 to vector<8x32xf32>
    %142 = arith.addf %141, %140 : vector<8x32xf32>
    %143 = arith.divf %141, %142 : vector<8x32xf32>
    %c0_69 = arith.constant 0 : index
    %c0_70 = arith.constant 0 : index
    %144 = vector.load %arg8[%c0_69, %c0_70] : memref<8x32xf32, #tpu.memory_space<vmem>>, vector<8x32xf32>
    %145 = arith.mulf %135, %144 : vector<8x32xf32>
    %146 = arith.mulf %129, %137 : vector<8x32xf32>
    %147 = arith.addf %145, %146 : vector<8x32xf32>
    %148 = math.tanh %147 : vector<8x32xf32>
    %149 = arith.mulf %143, %148 : vector<8x32xf32>
    %c16_i32_71 = arith.constant 16 : i32
    %150 = arith.cmpi slt, %116, %c16_i32_71 : i32
    %c0_72 = arith.constant 0 : index
    %c0_73 = arith.constant 0 : index
    %151 = vector.load %arg7[%c0_72, %c0_73] : memref<8x32xf32, #tpu.memory_space<vmem>>, vector<8x32xf32>
    %152 = arith.select %150, %149, %151 : vector<8x32xf32>
    %c0_74 = arith.constant 0 : index
    %c0_75 = arith.constant 0 : index
    %153 = vector.load %arg7[%c0_74, %c0_75] : memref<8x32xf32, #tpu.memory_space<vmem>>, vector<8x32xf32>
    tpu.vector_store %arg7[%c0_74, %c0_75], %152 {strides = array<i32>} : memref<8x32xf32, #tpu.memory_space<vmem>>, vector<8x32xf32>,
    %c0_76 = arith.constant 0 : index
    %c0_77 = arith.constant 0 : index
    %154 = vector.load %arg8[%c0_76, %c0_77] : memref<8x32xf32, #tpu.memory_space<vmem>>, vector<8x32xf32>
    %155 = arith.select %150, %147, %154 : vector<8x32xf32>
    %c0_78 = arith.constant 0 : index
    %c0_79 = arith.constant 0 : index
    %156 = vector.load %arg8[%c0_78, %c0_79] : memref<8x32xf32, #tpu.memory_space<vmem>>, vector<8x32xf32>
    tpu.vector_store %arg8[%c0_78, %c0_79], %155 {strides = array<i32>} : memref<8x32xf32, #tpu.memory_space<vmem>>, vector<8x32xf32>,
    %c3_i32 = arith.constant 3 : i32
    %c2_i32_80 = arith.constant 2 : i32
    %157 = arith.muli %c2_i32_80, %c3_i32 : i32
    %c7_i32_81 = arith.constant 7 : i32
    %158 = arith.subi %c7_i32_81, %157 : i32
    %159 = arith.muli %arg0, %158 : i32
    %160 = arith.addi %c3_i32, %159 : i32
    %c8_i32_82 = arith.constant 8 : i32
    %161 = arith.muli %18, %c8_i32_82 : i32
    %162 = arith.addi %161, %160 : i32
    %c8_i32_83 = arith.constant 8 : i32
    %163 = arith.muli %160, %c8_i32_83 : i32
    %164 = tpu.assume_multiple %163, 8 : i32
    %165 = arith.index_cast %164 : i32 to index
    %c0_84 = arith.constant 0 : index
    %166 = vector.load %arg9[%165, %c0_84] : memref<64x128xf32, #tpu.memory_space<vmem>>, vector<8x128xf32>
    %c0_85 = arith.constant 0 : index
    %c0_86 = arith.constant 0 : index
    %167 = vector.load %arg7[%c0_85, %c0_86] : memref<8x32xf32, #tpu.memory_space<vmem>>, vector<8x32xf32>
    %cst_87 = arith.constant dense<0.000000e+00> : vector<8x128xf32>
    %168 = tpu.matmul %167, %14, %cst_87 {dimension_numbers = #tpu.dot_dimension_numbers<[1], [0], [0], [1], [0, 0, 1, 1], [], []>} : vector<8x32xf32>, vector<32x128xf32>, vector<8x128xf32> -> vector<8x128xf32>
    %169 = arith.addf %166, %168 : vector<8x128xf32>
    %170 = vector.extract_strided_slice %169 {offsets = [0, 0], sizes = [8, 32], strides = [1, 1]} : vector<8x128xf32> to vector<8x32xf32>
    %171 = arith.negf %170 : vector<8x32xf32>
    %172 = math.exp %171 : vector<8x32xf32>
    %cst_88 = arith.constant 1.000000e+00 : f32
    %173 = vector.broadcast %cst_88 : f32 to vector<8x32xf32>
    %174 = arith.addf %173, %172 : vector<8x32xf32>
    %175 = arith.divf %173, %174 : vector<8x32xf32>
    %176 = vector.extract_strided_slice %169 {offsets = [0, 32], sizes = [8, 32], strides = [1, 1]} : vector<8x128xf32> to vector<8x32xf32>
    %177 = arith.negf %176 : vector<8x32xf32>
    %178 = math.exp %177 : vector<8x32xf32>
    %cst_89 = arith.constant 1.000000e+00 : f32
    %179 = vector.broadcast %cst_89 : f32 to vector<8x32xf32>
    %180 = arith.addf %179, %178 : vector<8x32xf32>
    %181 = arith.divf %179, %180 : vector<8x32xf32>
    %182 = vector.extract_strided_slice %169 {offsets = [0, 64], sizes = [8, 32], strides = [1, 1]} : vector<8x128xf32> to vector<8x32xf32>
    %183 = math.tanh %182 : vector<8x32xf32>
    %184 = vector.extract_strided_slice %169 {offsets = [0, 96], sizes = [8, 32], strides = [1, 1]} : vector<8x128xf32> to vector<8x32xf32>
    %185 = arith.negf %184 : vector<8x32xf32>
    %186 = math.exp %185 : vector<8x32xf32>
    %cst_90 = arith.constant 1.000000e+00 : f32
    %187 = vector.broadcast %cst_90 : f32 to vector<8x32xf32>
    %188 = arith.addf %187, %186 : vector<8x32xf32>
    %189 = arith.divf %187, %188 : vector<8x32xf32>
    %c0_91 = arith.constant 0 : index
    %c0_92 = arith.constant 0 : index
    %190 = vector.load %arg8[%c0_91, %c0_92] : memref<8x32xf32, #tpu.memory_space<vmem>>, vector<8x32xf32>
    %191 = arith.mulf %181, %190 : vector<8x32xf32>
    %192 = arith.mulf %175, %183 : vector<8x32xf32>
    %193 = arith.addf %191, %192 : vector<8x32xf32>
    %194 = math.tanh %193 : vector<8x32xf32>
    %195 = arith.mulf %189, %194 : vector<8x32xf32>
    %c16_i32_93 = arith.constant 16 : i32
    %196 = arith.cmpi slt, %162, %c16_i32_93 : i32
    %c0_94 = arith.constant 0 : index
    %c0_95 = arith.constant 0 : index
    %197 = vector.load %arg7[%c0_94, %c0_95] : memref<8x32xf32, #tpu.memory_space<vmem>>, vector<8x32xf32>
    %198 = arith.select %196, %195, %197 : vector<8x32xf32>
    %c0_96 = arith.constant 0 : index
    %c0_97 = arith.constant 0 : index
    %199 = vector.load %arg7[%c0_96, %c0_97] : memref<8x32xf32, #tpu.memory_space<vmem>>, vector<8x32xf32>
    tpu.vector_store %arg7[%c0_96, %c0_97], %198 {strides = array<i32>} : memref<8x32xf32, #tpu.memory_space<vmem>>, vector<8x32xf32>,
    %c0_98 = arith.constant 0 : index
    %c0_99 = arith.constant 0 : index
    %200 = vector.load %arg8[%c0_98, %c0_99] : memref<8x32xf32, #tpu.memory_space<vmem>>, vector<8x32xf32>
    %201 = arith.select %196, %193, %200 : vector<8x32xf32>
    %c0_100 = arith.constant 0 : index
    %c0_101 = arith.constant 0 : index
    %202 = vector.load %arg8[%c0_100, %c0_101] : memref<8x32xf32, #tpu.memory_space<vmem>>, vector<8x32xf32>
    tpu.vector_store %arg8[%c0_100, %c0_101], %201 {strides = array<i32>} : memref<8x32xf32, #tpu.memory_space<vmem>>, vector<8x32xf32>,
    %c4_i32 = arith.constant 4 : i32
    %c2_i32_102 = arith.constant 2 : i32
    %203 = arith.muli %c2_i32_102, %c4_i32 : i32
    %c7_i32_103 = arith.constant 7 : i32
    %204 = arith.subi %c7_i32_103, %203 : i32
    %205 = arith.muli %arg0, %204 : i32
    %206 = arith.addi %c4_i32, %205 : i32
    %c8_i32_104 = arith.constant 8 : i32
    %207 = arith.muli %18, %c8_i32_104 : i32
    %208 = arith.addi %207, %206 : i32
    %c8_i32_105 = arith.constant 8 : i32
    %209 = arith.muli %206, %c8_i32_105 : i32
    %210 = tpu.assume_multiple %209, 8 : i32
    %211 = arith.index_cast %210 : i32 to index
    %c0_106 = arith.constant 0 : index
    %212 = vector.load %arg9[%211, %c0_106] : memref<64x128xf32, #tpu.memory_space<vmem>>, vector<8x128xf32>
    %c0_107 = arith.constant 0 : index
    %c0_108 = arith.constant 0 : index
    %213 = vector.load %arg7[%c0_107, %c0_108] : memref<8x32xf32, #tpu.memory_space<vmem>>, vector<8x32xf32>
    %cst_109 = arith.constant dense<0.000000e+00> : vector<8x128xf32>
    %214 = tpu.matmul %213, %14, %cst_109 {dimension_numbers = #tpu.dot_dimension_numbers<[1], [0], [0], [1], [0, 0, 1, 1], [], []>} : vector<8x32xf32>, vector<32x128xf32>, vector<8x128xf32> -> vector<8x128xf32>
    %215 = arith.addf %212, %214 : vector<8x128xf32>
    %216 = vector.extract_strided_slice %215 {offsets = [0, 0], sizes = [8, 32], strides = [1, 1]} : vector<8x128xf32> to vector<8x32xf32>
    %217 = arith.negf %216 : vector<8x32xf32>
    %218 = math.exp %217 : vector<8x32xf32>
    %cst_110 = arith.constant 1.000000e+00 : f32
    %219 = vector.broadcast %cst_110 : f32 to vector<8x32xf32>
    %220 = arith.addf %219, %218 : vector<8x32xf32>
    %221 = arith.divf %219, %220 : vector<8x32xf32>
    %222 = vector.extract_strided_slice %215 {offsets = [0, 32], sizes = [8, 32], strides = [1, 1]} : vector<8x128xf32> to vector<8x32xf32>
    %223 = arith.negf %222 : vector<8x32xf32>
    %224 = math.exp %223 : vector<8x32xf32>
    %cst_111 = arith.constant 1.000000e+00 : f32
    %225 = vector.broadcast %cst_111 : f32 to vector<8x32xf32>
    %226 = arith.addf %225, %224 : vector<8x32xf32>
    %227 = arith.divf %225, %226 : vector<8x32xf32>
    %228 = vector.extract_strided_slice %215 {offsets = [0, 64], sizes = [8, 32], strides = [1, 1]} : vector<8x128xf32> to vector<8x32xf32>
    %229 = math.tanh %228 : vector<8x32xf32>
    %230 = vector.extract_strided_slice %215 {offsets = [0, 96], sizes = [8, 32], strides = [1, 1]} : vector<8x128xf32> to vector<8x32xf32>
    %231 = arith.negf %230 : vector<8x32xf32>
    %232 = math.exp %231 : vector<8x32xf32>
    %cst_112 = arith.constant 1.000000e+00 : f32
    %233 = vector.broadcast %cst_112 : f32 to vector<8x32xf32>
    %234 = arith.addf %233, %232 : vector<8x32xf32>
    %235 = arith.divf %233, %234 : vector<8x32xf32>
    %c0_113 = arith.constant 0 : index
    %c0_114 = arith.constant 0 : index
    %236 = vector.load %arg8[%c0_113, %c0_114] : memref<8x32xf32, #tpu.memory_space<vmem>>, vector<8x32xf32>
    %237 = arith.mulf %227, %236 : vector<8x32xf32>
    %238 = arith.mulf %221, %229 : vector<8x32xf32>
    %239 = arith.addf %237, %238 : vector<8x32xf32>
    %240 = math.tanh %239 : vector<8x32xf32>
    %241 = arith.mulf %235, %240 : vector<8x32xf32>
    %c16_i32_115 = arith.constant 16 : i32
    %242 = arith.cmpi slt, %208, %c16_i32_115 : i32
    %c0_116 = arith.constant 0 : index
    %c0_117 = arith.constant 0 : index
    %243 = vector.load %arg7[%c0_116, %c0_117] : memref<8x32xf32, #tpu.memory_space<vmem>>, vector<8x32xf32>
    %244 = arith.select %242, %241, %243 : vector<8x32xf32>
    %c0_118 = arith.constant 0 : index
    %c0_119 = arith.constant 0 : index
    %245 = vector.load %arg7[%c0_118, %c0_119] : memref<8x32xf32, #tpu.memory_space<vmem>>, vector<8x32xf32>
    tpu.vector_store %arg7[%c0_118, %c0_119], %244 {strides = array<i32>} : memref<8x32xf32, #tpu.memory_space<vmem>>, vector<8x32xf32>,
    %c0_120 = arith.constant 0 : index
    %c0_121 = arith.constant 0 : index
    %246 = vector.load %arg8[%c0_120, %c0_121] : memref<8x32xf32, #tpu.memory_space<vmem>>, vector<8x32xf32>
    %247 = arith.select %242, %239, %246 : vector<8x32xf32>
    %c0_122 = arith.constant 0 : index
    %c0_123 = arith.constant 0 : index
    %248 = vector.load %arg8[%c0_122, %c0_123] : memref<8x32xf32, #tpu.memory_space<vmem>>, vector<8x32xf32>
    tpu.vector_store %arg8[%c0_122, %c0_123], %247 {strides = array<i32>} : memref<8x32xf32, #tpu.memory_space<vmem>>, vector<8x32xf32>,
    %c5_i32 = arith.constant 5 : i32
    %c2_i32_124 = arith.constant 2 : i32
    %249 = arith.muli %c2_i32_124, %c5_i32 : i32
    %c7_i32_125 = arith.constant 7 : i32
    %250 = arith.subi %c7_i32_125, %249 : i32
    %251 = arith.muli %arg0, %250 : i32
    %252 = arith.addi %c5_i32, %251 : i32
    %c8_i32_126 = arith.constant 8 : i32
    %253 = arith.muli %18, %c8_i32_126 : i32
    %254 = arith.addi %253, %252 : i32
    %c8_i32_127 = arith.constant 8 : i32
    %255 = arith.muli %252, %c8_i32_127 : i32
    %256 = tpu.assume_multiple %255, 8 : i32
    %257 = arith.index_cast %256 : i32 to index
    %c0_128 = arith.constant 0 : index
    %258 = vector.load %arg9[%257, %c0_128] : memref<64x128xf32, #tpu.memory_space<vmem>>, vector<8x128xf32>
    %c0_129 = arith.constant 0 : index
    %c0_130 = arith.constant 0 : index
    %259 = vector.load %arg7[%c0_129, %c0_130] : memref<8x32xf32, #tpu.memory_space<vmem>>, vector<8x32xf32>
    %cst_131 = arith.constant dense<0.000000e+00> : vector<8x128xf32>
    %260 = tpu.matmul %259, %14, %cst_131 {dimension_numbers = #tpu.dot_dimension_numbers<[1], [0], [0], [1], [0, 0, 1, 1], [], []>} : vector<8x32xf32>, vector<32x128xf32>, vector<8x128xf32> -> vector<8x128xf32>
    %261 = arith.addf %258, %260 : vector<8x128xf32>
    %262 = vector.extract_strided_slice %261 {offsets = [0, 0], sizes = [8, 32], strides = [1, 1]} : vector<8x128xf32> to vector<8x32xf32>
    %263 = arith.negf %262 : vector<8x32xf32>
    %264 = math.exp %263 : vector<8x32xf32>
    %cst_132 = arith.constant 1.000000e+00 : f32
    %265 = vector.broadcast %cst_132 : f32 to vector<8x32xf32>
    %266 = arith.addf %265, %264 : vector<8x32xf32>
    %267 = arith.divf %265, %266 : vector<8x32xf32>
    %268 = vector.extract_strided_slice %261 {offsets = [0, 32], sizes = [8, 32], strides = [1, 1]} : vector<8x128xf32> to vector<8x32xf32>
    %269 = arith.negf %268 : vector<8x32xf32>
    %270 = math.exp %269 : vector<8x32xf32>
    %cst_133 = arith.constant 1.000000e+00 : f32
    %271 = vector.broadcast %cst_133 : f32 to vector<8x32xf32>
    %272 = arith.addf %271, %270 : vector<8x32xf32>
    %273 = arith.divf %271, %272 : vector<8x32xf32>
    %274 = vector.extract_strided_slice %261 {offsets = [0, 64], sizes = [8, 32], strides = [1, 1]} : vector<8x128xf32> to vector<8x32xf32>
    %275 = math.tanh %274 : vector<8x32xf32>
    %276 = vector.extract_strided_slice %261 {offsets = [0, 96], sizes = [8, 32], strides = [1, 1]} : vector<8x128xf32> to vector<8x32xf32>
    %277 = arith.negf %276 : vector<8x32xf32>
    %278 = math.exp %277 : vector<8x32xf32>
    %cst_134 = arith.constant 1.000000e+00 : f32
    %279 = vector.broadcast %cst_134 : f32 to vector<8x32xf32>
    %280 = arith.addf %279, %278 : vector<8x32xf32>
    %281 = arith.divf %279, %280 : vector<8x32xf32>
    %c0_135 = arith.constant 0 : index
    %c0_136 = arith.constant 0 : index
    %282 = vector.load %arg8[%c0_135, %c0_136] : memref<8x32xf32, #tpu.memory_space<vmem>>, vector<8x32xf32>
    %283 = arith.mulf %273, %282 : vector<8x32xf32>
    %284 = arith.mulf %267, %275 : vector<8x32xf32>
    %285 = arith.addf %283, %284 : vector<8x32xf32>
    %286 = math.tanh %285 : vector<8x32xf32>
    %287 = arith.mulf %281, %286 : vector<8x32xf32>
    %c16_i32_137 = arith.constant 16 : i32
    %288 = arith.cmpi slt, %254, %c16_i32_137 : i32
    %c0_138 = arith.constant 0 : index
    %c0_139 = arith.constant 0 : index
    %289 = vector.load %arg7[%c0_138, %c0_139] : memref<8x32xf32, #tpu.memory_space<vmem>>, vector<8x32xf32>
    %290 = arith.select %288, %287, %289 : vector<8x32xf32>
    %c0_140 = arith.constant 0 : index
    %c0_141 = arith.constant 0 : index
    %291 = vector.load %arg7[%c0_140, %c0_141] : memref<8x32xf32, #tpu.memory_space<vmem>>, vector<8x32xf32>
    tpu.vector_store %arg7[%c0_140, %c0_141], %290 {strides = array<i32>} : memref<8x32xf32, #tpu.memory_space<vmem>>, vector<8x32xf32>,
    %c0_142 = arith.constant 0 : index
    %c0_143 = arith.constant 0 : index
    %292 = vector.load %arg8[%c0_142, %c0_143] : memref<8x32xf32, #tpu.memory_space<vmem>>, vector<8x32xf32>
    %293 = arith.select %288, %285, %292 : vector<8x32xf32>
    %c0_144 = arith.constant 0 : index
    %c0_145 = arith.constant 0 : index
    %294 = vector.load %arg8[%c0_144, %c0_145] : memref<8x32xf32, #tpu.memory_space<vmem>>, vector<8x32xf32>
    tpu.vector_store %arg8[%c0_144, %c0_145], %293 {strides = array<i32>} : memref<8x32xf32, #tpu.memory_space<vmem>>, vector<8x32xf32>,
    %c6_i32 = arith.constant 6 : i32
    %c2_i32_146 = arith.constant 2 : i32
    %295 = arith.muli %c2_i32_146, %c6_i32 : i32
    %c7_i32_147 = arith.constant 7 : i32
    %296 = arith.subi %c7_i32_147, %295 : i32
    %297 = arith.muli %arg0, %296 : i32
    %298 = arith.addi %c6_i32, %297 : i32
    %c8_i32_148 = arith.constant 8 : i32
    %299 = arith.muli %18, %c8_i32_148 : i32
    %300 = arith.addi %299, %298 : i32
    %c8_i32_149 = arith.constant 8 : i32
    %301 = arith.muli %298, %c8_i32_149 : i32
    %302 = tpu.assume_multiple %301, 8 : i32
    %303 = arith.index_cast %302 : i32 to index
    %c0_150 = arith.constant 0 : index
    %304 = vector.load %arg9[%303, %c0_150] : memref<64x128xf32, #tpu.memory_space<vmem>>, vector<8x128xf32>
    %c0_151 = arith.constant 0 : index
    %c0_152 = arith.constant 0 : index
    %305 = vector.load %arg7[%c0_151, %c0_152] : memref<8x32xf32, #tpu.memory_space<vmem>>, vector<8x32xf32>
    %cst_153 = arith.constant dense<0.000000e+00> : vector<8x128xf32>
    %306 = tpu.matmul %305, %14, %cst_153 {dimension_numbers = #tpu.dot_dimension_numbers<[1], [0], [0], [1], [0, 0, 1, 1], [], []>} : vector<8x32xf32>, vector<32x128xf32>, vector<8x128xf32> -> vector<8x128xf32>
    %307 = arith.addf %304, %306 : vector<8x128xf32>
    %308 = vector.extract_strided_slice %307 {offsets = [0, 0], sizes = [8, 32], strides = [1, 1]} : vector<8x128xf32> to vector<8x32xf32>
    %309 = arith.negf %308 : vector<8x32xf32>
    %310 = math.exp %309 : vector<8x32xf32>
    %cst_154 = arith.constant 1.000000e+00 : f32
    %311 = vector.broadcast %cst_154 : f32 to vector<8x32xf32>
    %312 = arith.addf %311, %310 : vector<8x32xf32>
    %313 = arith.divf %311, %312 : vector<8x32xf32>
    %314 = vector.extract_strided_slice %307 {offsets = [0, 32], sizes = [8, 32], strides = [1, 1]} : vector<8x128xf32> to vector<8x32xf32>
    %315 = arith.negf %314 : vector<8x32xf32>
    %316 = math.exp %315 : vector<8x32xf32>
    %cst_155 = arith.constant 1.000000e+00 : f32
    %317 = vector.broadcast %cst_155 : f32 to vector<8x32xf32>
    %318 = arith.addf %317, %316 : vector<8x32xf32>
    %319 = arith.divf %317, %318 : vector<8x32xf32>
    %320 = vector.extract_strided_slice %307 {offsets = [0, 64], sizes = [8, 32], strides = [1, 1]} : vector<8x128xf32> to vector<8x32xf32>
    %321 = math.tanh %320 : vector<8x32xf32>
    %322 = vector.extract_strided_slice %307 {offsets = [0, 96], sizes = [8, 32], strides = [1, 1]} : vector<8x128xf32> to vector<8x32xf32>
    %323 = arith.negf %322 : vector<8x32xf32>
    %324 = math.exp %323 : vector<8x32xf32>
    %cst_156 = arith.constant 1.000000e+00 : f32
    %325 = vector.broadcast %cst_156 : f32 to vector<8x32xf32>
    %326 = arith.addf %325, %324 : vector<8x32xf32>
    %327 = arith.divf %325, %326 : vector<8x32xf32>
    %c0_157 = arith.constant 0 : index
    %c0_158 = arith.constant 0 : index
    %328 = vector.load %arg8[%c0_157, %c0_158] : memref<8x32xf32, #tpu.memory_space<vmem>>, vector<8x32xf32>
    %329 = arith.mulf %319, %328 : vector<8x32xf32>
    %330 = arith.mulf %313, %321 : vector<8x32xf32>
    %331 = arith.addf %329, %330 : vector<8x32xf32>
    %332 = math.tanh %331 : vector<8x32xf32>
    %333 = arith.mulf %327, %332 : vector<8x32xf32>
    %c16_i32_159 = arith.constant 16 : i32
    %334 = arith.cmpi slt, %300, %c16_i32_159 : i32
    %c0_160 = arith.constant 0 : index
    %c0_161 = arith.constant 0 : index
    %335 = vector.load %arg7[%c0_160, %c0_161] : memref<8x32xf32, #tpu.memory_space<vmem>>, vector<8x32xf32>
    %336 = arith.select %334, %333, %335 : vector<8x32xf32>
    %c0_162 = arith.constant 0 : index
    %c0_163 = arith.constant 0 : index
    %337 = vector.load %arg7[%c0_162, %c0_163] : memref<8x32xf32, #tpu.memory_space<vmem>>, vector<8x32xf32>
    tpu.vector_store %arg7[%c0_162, %c0_163], %336 {strides = array<i32>} : memref<8x32xf32, #tpu.memory_space<vmem>>, vector<8x32xf32>,
    %c0_164 = arith.constant 0 : index
    %c0_165 = arith.constant 0 : index
    %338 = vector.load %arg8[%c0_164, %c0_165] : memref<8x32xf32, #tpu.memory_space<vmem>>, vector<8x32xf32>
    %339 = arith.select %334, %331, %338 : vector<8x32xf32>
    %c0_166 = arith.constant 0 : index
    %c0_167 = arith.constant 0 : index
    %340 = vector.load %arg8[%c0_166, %c0_167] : memref<8x32xf32, #tpu.memory_space<vmem>>, vector<8x32xf32>
    tpu.vector_store %arg8[%c0_166, %c0_167], %339 {strides = array<i32>} : memref<8x32xf32, #tpu.memory_space<vmem>>, vector<8x32xf32>,
    %c7_i32_168 = arith.constant 7 : i32
    %c2_i32_169 = arith.constant 2 : i32
    %341 = arith.muli %c2_i32_169, %c7_i32_168 : i32
    %c7_i32_170 = arith.constant 7 : i32
    %342 = arith.subi %c7_i32_170, %341 : i32
    %343 = arith.muli %arg0, %342 : i32
    %344 = arith.addi %c7_i32_168, %343 : i32
    %c8_i32_171 = arith.constant 8 : i32
    %345 = arith.muli %18, %c8_i32_171 : i32
    %346 = arith.addi %345, %344 : i32
    %c8_i32_172 = arith.constant 8 : i32
    %347 = arith.muli %344, %c8_i32_172 : i32
    %348 = tpu.assume_multiple %347, 8 : i32
    %349 = arith.index_cast %348 : i32 to index
    %c0_173 = arith.constant 0 : index
    %350 = vector.load %arg9[%349, %c0_173] : memref<64x128xf32, #tpu.memory_space<vmem>>, vector<8x128xf32>
    %c0_174 = arith.constant 0 : index
    %c0_175 = arith.constant 0 : index
    %351 = vector.load %arg7[%c0_174, %c0_175] : memref<8x32xf32, #tpu.memory_space<vmem>>, vector<8x32xf32>
    %cst_176 = arith.constant dense<0.000000e+00> : vector<8x128xf32>
    %352 = tpu.matmul %351, %14, %cst_176 {dimension_numbers = #tpu.dot_dimension_numbers<[1], [0], [0], [1], [0, 0, 1, 1], [], []>} : vector<8x32xf32>, vector<32x128xf32>, vector<8x128xf32> -> vector<8x128xf32>
    %353 = arith.addf %350, %352 : vector<8x128xf32>
    %354 = vector.extract_strided_slice %353 {offsets = [0, 0], sizes = [8, 32], strides = [1, 1]} : vector<8x128xf32> to vector<8x32xf32>
    %355 = arith.negf %354 : vector<8x32xf32>
    %356 = math.exp %355 : vector<8x32xf32>
    %cst_177 = arith.constant 1.000000e+00 : f32
    %357 = vector.broadcast %cst_177 : f32 to vector<8x32xf32>
    %358 = arith.addf %357, %356 : vector<8x32xf32>
    %359 = arith.divf %357, %358 : vector<8x32xf32>
    %360 = vector.extract_strided_slice %353 {offsets = [0, 32], sizes = [8, 32], strides = [1, 1]} : vector<8x128xf32> to vector<8x32xf32>
    %361 = arith.negf %360 : vector<8x32xf32>
    %362 = math.exp %361 : vector<8x32xf32>
    %cst_178 = arith.constant 1.000000e+00 : f32
    %363 = vector.broadcast %cst_178 : f32 to vector<8x32xf32>
    %364 = arith.addf %363, %362 : vector<8x32xf32>
    %365 = arith.divf %363, %364 : vector<8x32xf32>
    %366 = vector.extract_strided_slice %353 {offsets = [0, 64], sizes = [8, 32], strides = [1, 1]} : vector<8x128xf32> to vector<8x32xf32>
    %367 = math.tanh %366 : vector<8x32xf32>
    %368 = vector.extract_strided_slice %353 {offsets = [0, 96], sizes = [8, 32], strides = [1, 1]} : vector<8x128xf32> to vector<8x32xf32>
    %369 = arith.negf %368 : vector<8x32xf32>
    %370 = math.exp %369 : vector<8x32xf32>
    %cst_179 = arith.constant 1.000000e+00 : f32
    %371 = vector.broadcast %cst_179 : f32 to vector<8x32xf32>
    %372 = arith.addf %371, %370 : vector<8x32xf32>
    %373 = arith.divf %371, %372 : vector<8x32xf32>
    %c0_180 = arith.constant 0 : index
    %c0_181 = arith.constant 0 : index
    %374 = vector.load %arg8[%c0_180, %c0_181] : memref<8x32xf32, #tpu.memory_space<vmem>>, vector<8x32xf32>
    %375 = arith.mulf %365, %374 : vector<8x32xf32>
    %376 = arith.mulf %359, %367 : vector<8x32xf32>
    %377 = arith.addf %375, %376 : vector<8x32xf32>
    %378 = math.tanh %377 : vector<8x32xf32>
    %379 = arith.mulf %373, %378 : vector<8x32xf32>
    %c16_i32_182 = arith.constant 16 : i32
    %380 = arith.cmpi slt, %346, %c16_i32_182 : i32
    %c0_183 = arith.constant 0 : index
    %c0_184 = arith.constant 0 : index
    %381 = vector.load %arg7[%c0_183, %c0_184] : memref<8x32xf32, #tpu.memory_space<vmem>>, vector<8x32xf32>
    %382 = arith.select %380, %379, %381 : vector<8x32xf32>
    %c0_185 = arith.constant 0 : index
    %c0_186 = arith.constant 0 : index
    %383 = vector.load %arg7[%c0_185, %c0_186] : memref<8x32xf32, #tpu.memory_space<vmem>>, vector<8x32xf32>
    tpu.vector_store %arg7[%c0_185, %c0_186], %382 {strides = array<i32>} : memref<8x32xf32, #tpu.memory_space<vmem>>, vector<8x32xf32>,
    %c0_187 = arith.constant 0 : index
    %c0_188 = arith.constant 0 : index
    %384 = vector.load %arg8[%c0_187, %c0_188] : memref<8x32xf32, #tpu.memory_space<vmem>>, vector<8x32xf32>
    %385 = arith.select %380, %377, %384 : vector<8x32xf32>
    %c0_189 = arith.constant 0 : index
    %c0_190 = arith.constant 0 : index
    %386 = vector.load %arg8[%c0_189, %c0_190] : memref<8x32xf32, #tpu.memory_space<vmem>>, vector<8x32xf32>
    tpu.vector_store %arg8[%c0_189, %c0_190], %385 {strides = array<i32>} : memref<8x32xf32, #tpu.memory_space<vmem>>, vector<8x32xf32>,
    %c8_i32_191 = arith.constant 8 : i32
    %c1_i32_192 = arith.constant 1 : i32
    %387 = arith.cmpi eq, %arg1, %c1_i32_192 : i32
    %388 = arith.extui %387 : i1 to i32
    %c0_i32_193 = arith.constant 0 : i32
    %389 = arith.cmpi ne, %388, %c0_i32_193 : i32
    scf.if %389 {
      %c0_194 = arith.constant 0 : index
      %c0_195 = arith.constant 0 : index
      %390 = vector.load %arg7[%c0_194, %c0_195] : memref<8x32xf32, #tpu.memory_space<vmem>>, vector<8x32xf32>
      %c0_196 = arith.constant 0 : index
      %c0_197 = arith.constant 0 : index
      %c0_198 = arith.constant 0 : index
      %391 = vector.load %arg6[%c0_196, %c0_197, %c0_198] : memref<1x8x32xf32, #tpu.memory_space<vmem>>, vector<1x8x32xf32>
      %392 = vector.shape_cast %391 : vector<1x8x32xf32> to vector<8x32xf32>
      %393 = vector.shape_cast %390 : vector<8x32xf32> to vector<1x8x32xf32>
      tpu.vector_store %arg6[%c0_196, %c0_197, %c0_198], %393 {strides = array<i32>} : memref<1x8x32xf32, #tpu.memory_space<vmem>>, vector<1x8x32xf32>,
    } else {
    }
    return
  }
  func.func @transform_0(%arg0: i32, %arg1: i32) -> (i32, i32, i32) {
    %c2_i32 = arith.constant 2 : i32
    %0 = arith.muli %c2_i32, %arg1 : i32
    %c1_i32 = arith.constant 1 : i32
    %1 = arith.subi %c1_i32, %0 : i32
    %2 = arith.muli %arg0, %1 : i32
    %3 = arith.addi %arg1, %2 : i32
    %c0_i32 = arith.constant 0 : i32
    %c0_i32_0 = arith.constant 0 : i32
    %c0_i32_1 = arith.constant 0 : i32
    return %3, %c0_i32, %c0_i32_0 : i32, i32, i32
  }
  func.func @transform_1(%arg0: i32, %arg1: i32) -> (i32, i32, i32) {
    %c0_i32 = arith.constant 0 : i32
    %c0_i32_0 = arith.constant 0 : i32
    %c0_i32_1 = arith.constant 0 : i32
    return %arg0, %c0_i32, %c0_i32_0 : i32, i32, i32
  }
  func.func @transform_2(%arg0: i32, %arg1: i32) -> (i32, i32, i32) {
    %c0_i32 = arith.constant 0 : i32
    %c0_i32_0 = arith.constant 0 : i32
    %c0_i32_1 = arith.constant 0 : i32
    return %arg0, %c0_i32, %c0_i32_0 : i32, i32, i32
  }
  func.func @transform_3(%arg0: i32, %arg1: i32) -> (i32, i32, i32) {
    %c0_i32 = arith.constant 0 : i32
    %c0_i32_0 = arith.constant 0 : i32
    %c0_i32_1 = arith.constant 0 : i32
    return %arg0, %c0_i32, %c0_i32_0 : i32, i32, i32
  }
  func.func @transform_4(%arg0: i32, %arg1: i32) -> (i32, i32, i32) {
    %c0_i32 = arith.constant 0 : i32
    %c0_i32_0 = arith.constant 0 : i32
    %c0_i32_1 = arith.constant 0 : i32
    return %arg0, %c0_i32, %c0_i32_0 : i32, i32, i32
  }
}

</mosaic_0001>

<llo_original>
// kernel: tpu_custom_call.1
$region0: #{tpu_custom_call.1}
  #allocation0 [shape = 'u32[]', space=smem, size = 0x4, offset = 0x4, fixed_abs, tag = 'smem constant byte address 0x4 - core index']
  #allocation1 [shape = 'u32[144,128]{1,0:T(1,128)}', space=vmem, size = 0x12000, scoped, tag = 'internal scratch']
  #allocation2 [shape = 'f32[8,32]{1,0:T(8,128)}', space=vmem, size = 0x1000, scoped, tag = 'scratch operand']
  #allocation3 [shape = 'f32[8,32]{1,0:T(8,128)}', space=vmem, size = 0x1000, scoped, tag = 'scratch operand']
  #allocation4 [shape = 'f32[64,128]{1,0:T(8,128)}', space=vmem, size = 0x8000, scoped, tag = 'scratch operand']
  %s0 = inlined_call_operand.vmem [shape: f32[2,64,32], index: 0, kind: input, shape index: {}]
  %s1 = inlined_call_operand.vmem [shape: f32[2,32,128], index: 1, kind: input, shape index: {}]
  %s2 = inlined_call_operand.vmem [shape: f32[2,32,128], index: 2, kind: input, shape index: {}]
  %s3 = inlined_call_operand.vmem [shape: f32[2,1,128], index: 3, kind: input, shape index: {}]
  %s4 = inlined_call_operand.hbm [shape: f32[2,8,32], index: 4, kind: output, shape index: {}]
  %s5 = sld [smem:[#allocation0]]
  $region57: #{tpu_custom_call.1} parent=0
    _
  %s7 = ssub.s32 1, %s5
  %s8 = scalar_select 0, %s7, %s5
  $region1: #{tpu_custom_call.1} parent=0
    #allocation5 [shape = 'u8[8192]{0}', space=vmem, size = 0x2000, scoped, tag = 'output window, operand 0']
    #allocation6 [shape = 's32[2]{0}', space=sflag, size = 0x8, scoped, tag = 'scoped memory for tpu_custom_call.1']
    %9 = vsyncpa [#allocation6], 0
    %s10 = scalar_lea.sflag [#allocation6], 1
    %11 = vsyncpa %s10, 0
    loop: start=0, step=1, limit=6
    $region2: #{tpu_custom_call.1} parent=1 // loop_pre_header
      _
    $region3: #{tpu_custom_call.1} parent=1 // loop_header
      %s13 = sphi 0, %s17
      %p14 = scmp.ge.s32.totalorder %s13, 6
      %s20 = sphi 0, %s32
      %s21 = sphi 0, %s28
      %s22 = sphi 0, %s20
      %s23 = sphi 0, %s21
      %s24 = sphi 0, %s22
      %s25 = sphi 0, %s23
      %s43 = sphi 0, %s45
      %s46 = sphi 0, %s43
      %s47 = sphi 0, %s46
      %s63 = sphi 0, %s47
      %s69 = sphi 0, %s71
      %s72 = sphi 0, %s69
      %s73 = sphi 0, %s72
      %s89 = sphi 0, %s73
      %s95 = sphi 0, %s97
      %s98 = sphi 0, %s95
      %s99 = sphi 0, %s98
      %s115 = sphi 0, %s99
      %s121 = sphi 0, %s123
      %s124 = sphi 0, %s121
      %s125 = sphi 0, %s124
      %s141 = sphi 0, %s125
      %s147 = sphi 0, %s149
      %s150 = sphi 0, %s147
      %s151 = sphi 0, %s150
      %s167 = sphi 0, %s151
    $region4: #{tpu_custom_call.1} parent=1 // loop_header_branch
      %16 = sbr.rel (%p14) target = $region8
    $region5: #{tpu_custom_call.1} parent=1 // loop_body
      %s18 = ssub.s32 %s13, 1
      %s19 = ssub.s32 %s13, 2
      %s26 = sadd.s32 1, %s21
      %p27 = scmp.ge.s32.totalorder %s26, 2
      %s28 = scalar_select %p27, 0, %s26
      %s29 = sadd.s32 1, %s20
      %s30 = scalar_select %p27, %s29, %s20
      %p31 = scmp.ge.s32.totalorder %s30, 2
      %s32 = scalar_select %p31, 0, %s30
      %s33 = smul.u32 %s21, 2
      %s34 = ssub.s32 1, %s33
      %s35 = smul.u32 %s20, %s34
      %s36 = sadd.s32 %s21, %s35
      %s37 = smul.u32 %s28, 2
      %s38 = ssub.s32 1, %s37
      %s39 = smul.u32 %s32, %s38
      %s40 = sadd.s32 %s28, %s39
      %s41 = ssub.s32 %s36, %s40
      %p42 = scmp.eq.s32.totalorder %s41, 0
      %s44 = sadd.s32 %s43, 1
      %s45 = scalar_select %p42, %s43, %s44
      %p48 = pneg %p42
      %p49 = scmp.eq.s32.totalorder %s13, 3
      %p50 = por %p48, %p49
      %p51 = scmp.ne.s32.totalorder %s43, %s46
      %p52 = scmp.eq.s32.totalorder %s13, 0
      %p53 = por %p51, %p52
      %p54 = scmp.ne.s32.totalorder %s43, %s46
      %p55 = scmp.eq.s32.totalorder %s18, 3
      %p56 = por %p54, %p55
      %p57 = scmp.ne.s32.totalorder %s46, %s47
      %p58 = scmp.eq.s32.totalorder %s18, 0
      %p59 = por %p57, %p58
      %p60 = scmp.ne.s32.totalorder %s46, %s47
      %p61 = scmp.eq.s32.totalorder %s19, 3
      %p62 = por %p60, %p61
      %p64 = scmp.ne.s32.totalorder %s47, %s63
      %p65 = scmp.eq.s32.totalorder %s19, 0
      %p66 = por %p64, %p65
      %s67 = ssub.s32 %s20, %s32
      %p68 = scmp.eq.s32.totalorder %s67, 0
      %s70 = sadd.s32 %s69, 1
      %s71 = scalar_select %p68, %s69, %s70
      %p74 = pneg %p68
      %p75 = scmp.eq.s32.totalorder %s13, 3
      %p76 = por %p74, %p75
      %p77 = scmp.ne.s32.totalorder %s69, %s72
      %p78 = scmp.eq.s32.totalorder %s13, 0
      %p79 = por %p77, %p78
      %p80 = scmp.ne.s32.totalorder %s69, %s72
      %p81 = scmp.eq.s32.totalorder %s18, 3
      %p82 = por %p80, %p81
      %p83 = scmp.ne.s32.totalorder %s72, %s73
      %p84 = scmp.eq.s32.totalorder %s18, 0
      %p85 = por %p83, %p84
      %p86 = scmp.ne.s32.totalorder %s72, %s73
      %p87 = scmp.eq.s32.totalorder %s19, 3
      %p88 = por %p86, %p87
      %p90 = scmp.ne.s32.totalorder %s73, %s89
      %p91 = scmp.eq.s32.totalorder %s19, 0
      %p92 = por %p90, %p91
      %s93 = ssub.s32 %s20, %s32
      %p94 = scmp.eq.s32.totalorder %s93, 0
      %s96 = sadd.s32 %s95, 1
      %s97 = scalar_select %p94, %s95, %s96
      %p100 = pneg %p94
      %p101 = scmp.eq.s32.totalorder %s13, 3
      %p102 = por %p100, %p101
      %p103 = scmp.ne.s32.totalorder %s95, %s98
      %p104 = scmp.eq.s32.totalorder %s13, 0
      %p105 = por %p103, %p104
      %p106 = scmp.ne.s32.totalorder %s95, %s98
      %p107 = scmp.eq.s32.totalorder %s18, 3
      %p108 = por %p106, %p107
      %p109 = scmp.ne.s32.totalorder %s98, %s99
      %p110 = scmp.eq.s32.totalorder %s18, 0
      %p111 = por %p109, %p110
      %p112 = scmp.ne.s32.totalorder %s98, %s99
      %p113 = scmp.eq.s32.totalorder %s19, 3
      %p114 = por %p112, %p113
      %p116 = scmp.ne.s32.totalorder %s99, %s115
      %p117 = scmp.eq.s32.totalorder %s19, 0
      %p118 = por %p116, %p117
      %s119 = ssub.s32 %s20, %s32
      %p120 = scmp.eq.s32.totalorder %s119, 0
      %s122 = sadd.s32 %s121, 1
      %s123 = scalar_select %p120, %s121, %s122
      %p126 = pneg %p120
      %p127 = scmp.eq.s32.totalorder %s13, 3
      %p128 = por %p126, %p127
      %p129 = scmp.ne.s32.totalorder %s121, %s124
      %p130 = scmp.eq.s32.totalorder %s13, 0
      %p131 = por %p129, %p130
      %p132 = scmp.ne.s32.totalorder %s121, %s124
      %p133 = scmp.eq.s32.totalorder %s18, 3
      %p134 = por %p132, %p133
      %p135 = scmp.ne.s32.totalorder %s124, %s125
      %p136 = scmp.eq.s32.totalorder %s18, 0
      %p137 = por %p135, %p136
      %p138 = scmp.ne.s32.totalorder %s124, %s125
      %p139 = scmp.eq.s32.totalorder %s19, 3
      %p140 = por %p138, %p139
      %p142 = scmp.ne.s32.totalorder %s125, %s141
      %p143 = scmp.eq.s32.totalorder %s19, 0
      %p144 = por %p142, %p143
      %s145 = ssub.s32 %s20, %s32
      %p146 = scmp.eq.s32.totalorder %s145, 0
      %s148 = sadd.s32 %s147, 1
      %s149 = scalar_select %p146, %s147, %s148
      %p152 = pneg %p146
      %p153 = scmp.eq.s32.totalorder %s13, 3
      %p154 = por %p152, %p153
      %p155 = scmp.ne.s32.totalorder %s147, %s150
      %p156 = scmp.eq.s32.totalorder %s13, 0
      %p157 = por %p155, %p156
      %p158 = scmp.ne.s32.totalorder %s147, %s150
      %p159 = scmp.eq.s32.totalorder %s18, 3
      %p160 = por %p158, %p159
      %p161 = scmp.ne.s32.totalorder %s150, %s151
      %p162 = scmp.eq.s32.totalorder %s18, 0
      %p163 = por %p161, %p162
      %p164 = scmp.ne.s32.totalorder %s150, %s151
      %p165 = scmp.eq.s32.totalorder %s19, 3
      %p166 = por %p164, %p165
      %p168 = scmp.ne.s32.totalorder %s151, %s167
      %p169 = scmp.eq.s32.totalorder %s19, 0
      %p170 = por %p168, %p169
      %p171 = scmp.le.s32.totalorder 1, %s13
      %p172 = scmp.lt.s32.totalorder %s13, 5
      %p173 = pnand %p171, %p172
      %p174 = pneg %p173
      // Predicated region
      $region9: #{tpu_custom_call.1} parent=5 // pred_check
        _
      $region10: #{tpu_custom_call.1} parent=5 // pred_check_branch
        %176 = sbr.rel (%p173) target = $region12
      $region11: #{tpu_custom_call.1} parent=5 // pred_region
        %s177 = ssub.s32 %s13, 1
      $region12: #{tpu_custom_call.1} parent=5 // pred_fallthru
        _
      %p178 = scmp.lt.s32.totalorder %s13, 4
      // Predicated region
      $region13: #{tpu_custom_call.1} parent=5 // pred_check
        %p179 = pneg %p178
      $region14: #{tpu_custom_call.1} parent=5 // pred_check_branch
        %181 = sbr.rel (%p179) target = $region16
      $region15: #{tpu_custom_call.1} parent=5 // pred_region
        // Predicated region
        $region17: #{tpu_custom_call.1} parent=15 // pred_check
          %p182 = pneg %p53
        $region18: #{tpu_custom_call.1} parent=15 // pred_check_branch
          %184 = sbr.rel (%p182) target = $region20
        $region19: #{tpu_custom_call.1} parent=15 // pred_region
          %s185 = smul.u32 %s21, 2
          %s186 = ssub.s32 1, %s185
          %s187 = smul.u32 %s20, %s186
          %s188 = sadd.s32 %s21, %s187
          %p189 = scmp.lt.s32.totalorder %s188, 1
          %s190 = scalar_select %p189, %s188, 1
          %s191 = smul.addr %s190, 8
          %s192 = smul.addr %s191, 8
          %s193 = scalar_lea.vmem %s0, %s192
          %s194 = smul.u32 %s21, 2
          %s195 = ssub.s32 1, %s194
          %s196 = smul.u32 %s20, %s195
          %s197 = sadd.s32 %s21, %s196
        $region20: #{tpu_custom_call.1} parent=15 // pred_fallthru
          _
        // Predicated region
        $region21: #{tpu_custom_call.1} parent=15 // pred_check
          %p198 = pneg %p79
        $region22: #{tpu_custom_call.1} parent=15 // pred_check_branch
          %200 = sbr.rel (%p198) target = $region24
        $region23: #{tpu_custom_call.1} parent=15 // pred_region
          %p201 = scmp.lt.s32.totalorder %s20, 1
          %s202 = scalar_select %p201, %s20, 1
          %s203 = smul.addr %s202, 4
          %s204 = smul.addr %s203, 8
          %s205 = scalar_lea.vmem %s1, %s204
        $region24: #{tpu_custom_call.1} parent=15 // pred_fallthru
          _
        // Predicated region
        $region25: #{tpu_custom_call.1} parent=15 // pred_check
          %p206 = pneg %p105
        $region26: #{tpu_custom_call.1} parent=15 // pred_check_branch
          %208 = sbr.rel (%p206) target = $region28
        $region27: #{tpu_custom_call.1} parent=15 // pred_region
          %p209 = scmp.lt.s32.totalorder %s20, 1
          %s210 = scalar_select %p209, %s20, 1
          %s211 = smul.addr %s210, 4
          %s212 = smul.addr %s211, 8
          %s213 = scalar_lea.vmem %s2, %s212
        $region28: #{tpu_custom_call.1} parent=15 // pred_fallthru
          _
        // Predicated region
        $region29: #{tpu_custom_call.1} parent=15 // pred_check
          %p214 = pneg %p131
        $region30: #{tpu_custom_call.1} parent=15 // pred_check_branch
          %216 = sbr.rel (%p214) target = $region32
        $region31: #{tpu_custom_call.1} parent=15 // pred_region
          %p217 = scmp.lt.s32.totalorder %s20, 1
          %s218 = scalar_select %p217, %s20, 1
          %s219 = scalar_lea.vmem %s3, %s218
        $region32: #{tpu_custom_call.1} parent=15 // pred_fallthru
          _
      $region16: #{tpu_custom_call.1} parent=5 // pred_fallthru
        _
      %p220 = scmp.le.s32.totalorder 1, %s13
      %p221 = scmp.lt.s32.totalorder %s13, 5
      %p222 = pnand %p220, %p221
      %p223 = pneg %p222
      // Predicated region
      $region33: #{tpu_custom_call.1} parent=5 // pred_check
        _
      $region34: #{tpu_custom_call.1} parent=5 // pred_check_branch
        %225 = sbr.rel (%p222) target = $region36
      $region35: #{tpu_custom_call.1} parent=5 // pred_region
        %s226 = ssub.s32 %s13, 1
        %s227 = smul.u32 %s23, 2
        %s228 = ssub.s32 1, %s227
        %s229 = smul.u32 %s22, %s228
        %s230 = sadd.s32 %s23, %s229
        %p231 = scmp.lt.s32.totalorder %s230, 1
        %s232 = scalar_select %p231, %s230, 1
        %s233 = smul.addr %s232, 8
        %s234 = smul.addr %s233, 8
        %s235 = scalar_lea.vmem %s0, %s234
        %p236 = pneg %p59
        %p237 = pneg %p56
        %p238 = scmp.lt.s32.totalorder %s22, 1
        %s239 = scalar_select %p238, %s22, 1
        %s240 = smul.addr %s239, 4
        %s241 = smul.addr %s240, 8
        %s242 = scalar_lea.vmem %s1, %s241
        %p243 = pneg %p85
        %p244 = pneg %p82
        %p245 = scmp.lt.s32.totalorder %s22, 1
        %s246 = scalar_select %p245, %s22, 1
        %s247 = smul.addr %s246, 4
        %s248 = smul.addr %s247, 8
        %s249 = scalar_lea.vmem %s2, %s248
        %p250 = pneg %p111
        %p251 = pneg %p108
        %p252 = scmp.lt.s32.totalorder %s22, 1
        %s253 = scalar_select %p252, %s22, 1
        %s254 = scalar_lea.vmem %s3, %s253
        %p255 = pneg %p137
        %p256 = pneg %p134
        %p257 = pneg %p163
        %p258 = pneg %p160
        %s259 = sand.u32 %s150, 1
        %s260 = scalar_lea.sflag [#allocation6], %s259
        %s261 = sand.u32 %s150, 1
        %s262 = smul.addr %s261, 8
        %s263 = scalar_lea.vmem [#allocation5], %s262
        %s264 = smul.u32 %s23, 2
        %s265 = ssub.s32 1, %s264
        %s266 = smul.u32 %s22, %s265
        %s267 = sadd.s32 %s23, %s266
        %p268 = scmp.lt.s32.totalorder %s267, 1
        %s269 = scalar_select %p268, %s267, 1
        %s270 = smul.addr %s269, 8
        %s271 = smul.addr %s270, 8
        %s272 = scalar_lea.vmem %s0, %s271
        %s273 = smul.u32 %s23, 2
        %s274 = ssub.s32 1, %s273
        %s275 = smul.u32 %s22, %s274
        %s276 = sadd.s32 %s23, %s275
        %p277 = scmp.lt.s32.totalorder %s22, 1
        %s278 = scalar_select %p277, %s22, 1
        %s279 = smul.addr %s278, 4
        %s280 = smul.addr %s279, 8
        %s281 = scalar_lea.vmem %s1, %s280
        %p282 = scmp.lt.s32.totalorder %s22, 1
        %s283 = scalar_select %p282, %s22, 1
        %s284 = smul.addr %s283, 4
        %s285 = smul.addr %s284, 8
        %s286 = scalar_lea.vmem %s2, %s285
        %p287 = scmp.lt.s32.totalorder %s22, 1
        %s288 = scalar_select %p287, %s22, 1
        %s289 = scalar_lea.vmem %s3, %s288
        %p290 = scmp.eq.s32.totalorder %s23, 0
        // Predicated region
        $region37: #{tpu_custom_call.1} parent=35 // pred_check
          %p291 = pneg %p290
        $region38: #{tpu_custom_call.1} parent=35 // pred_check_branch
          %293 = sbr.rel (%p291) target = $region40
        $region39: #{tpu_custom_call.1} parent=35 // pred_region
          %vm294 = vcmask 261120
          %295 = vst.msk [vmem:[#allocation2] sm:$0xff] %vm294, 0.0
          %296 = vst.msk [vmem:[#allocation3] sm:$0xff] %vm294, 0.0
        $region40: #{tpu_custom_call.1} parent=35 // pred_fallthru
          _
        %v297 = vld [vmem:[%s272] sm:$0xff]
        %v298 = vld [vmem:[%s272 + $0x8] sm:$0xff]
        %v299 = vld [vmem:[%s272 + $0x10] sm:$0xff]
        %v300 = vld [vmem:[%s272 + $0x18] sm:$0xff]
        %v301 = vld [vmem:[%s272 + $0x20] sm:$0xff]
        %v302 = vld [vmem:[%s272 + $0x28] sm:$0xff]
        %v303 = vld [vmem:[%s272 + $0x30] sm:$0xff]
        %v304 = vld [vmem:[%s272 + $0x38] sm:$0xff]
        %v305 = vld [vmem:[%s281] sm:$0xff]
        %v306 = vld [vmem:[%s281 + $0x8] sm:$0xff]
        %v307 = vld [vmem:[%s281 + $0x10] sm:$0xff]
        %v308 = vld [vmem:[%s281 + $0x18] sm:$0xff]
        %v309 = vld [vmem:[%s289] sm:$0x1]
        %v311 = vlaneseq
        %v312 = vshrl.u32 %v311, 7
        %v313 = vsub.s32 0, %v312
        %v314 = vrot.slane %v309, %v313
        %vm316 = vcmask 261120
        %v318 = vsel %vm316, %v297, 0
        %v321 = vsel %vm316, %v298, 0
        %v324 = vsel %vm316, %v299, 0
        %v327 = vsel %vm316, %v300, 0
        %v330 = vsel %vm316, %v301, 0
        %v333 = vsel %vm316, %v302, 0
        %v336 = vsel %vm316, %v303, 0
        %v339 = vsel %vm316, %v304, 0
        %341 = vmatprep.subr.mxu0 0.0
        %342 = vmatpush1.msra.mxu0 %v305
        %343 = vmatprep.subr.mxu0 0.0
        %344 = vmatpush1.msra.mxu0 %v306
        %345 = vmatprep.subr.mxu0 0.0
        %346 = vmatpush1.msra.mxu0 %v307
        %347 = vmatprep.subr.mxu0 0.0
        %348 = vmatpush1.msra.mxu0 %v308
        %349 = vmatprep.subr.mxu0 0.0
        %350 = vmatpush1.msra.mxu0 0.0
        %351 = vmatprep.subr.mxu0 0.0
        %352 = vmatpush1.msra.mxu0 0.0
        %353 = vmatprep.subr.mxu0 0.0
        %354 = vmatpush1.msra.mxu0 0.0
        %355 = vmatprep.subr.mxu0 0.0
        %356 = vmatpush1.msra.mxu0 0.0
        %357 = vmatprep.subr.mxu0 0.0
        %358 = vmatpush1.msra.mxu0 0.0
        %359 = vmatprep.subr.mxu0 0.0
        %360 = vmatpush1.msra.mxu0 0.0
        %361 = vmatprep.subr.mxu0 0.0
        %362 = vmatpush1.msra.mxu0 0.0
        %363 = vmatprep.subr.mxu0 0.0
        %364 = vmatpush1.msra.mxu0 0.0
        %365 = vmatprep.subr.mxu0 0.0
        %366 = vmatpush1.msra.mxu0 0.0
        %367 = vmatprep.subr.mxu0 0.0
        %368 = vmatpush1.msra.mxu0 0.0
        %369 = vmatprep.subr.mxu0 0.0
        %370 = vmatpush1.msra.mxu0 0.0
        %371 = vmatprep.subr.mxu0 0.0
        %372 = vmatpush1.msra.mxu0 0.0
        %373 = vmatprep.subr.mxu0 0.0
        %374 = vmatpush1.msra.mxu0 0.0
        %375 = vmatprep.subr.mxu0 0.0
        %376 = vmatpush1.msra.mxu0 0.0
        %377 = vmatprep.subr.mxu0 0.0
        %378 = vmatpush1.msra.mxu0 0.0
        %379 = vmatprep.subr.mxu0 0.0
        %380 = vmatpush1.msra.mxu0 0.0
        %381 = vmatprep.subr.mxu0 0.0
        %382 = vmatpush1.msra.mxu0 0.0
        %383 = vmatprep.subr.mxu0 0.0
        %384 = vmatpush1.msra.mxu0 0.0
        %385 = vmatprep.subr.mxu0 0.0
        %386 = vmatpush1.msra.mxu0 0.0
        %387 = vmatprep.subr.mxu0 0.0
        %388 = vmatpush1.msra.mxu0 0.0
        %389 = vmatprep.subr.mxu0 0.0
        %390 = vmatpush1.msra.mxu0 0.0
        %391 = vmatprep.subr.mxu0 0.0
        %392 = vmatpush1.msra.mxu0 0.0
        %393 = vmatprep.subr.mxu0 0.0
        %394 = vmatpush1.msra.mxu0 0.0
        %395 = vmatprep.subr.mxu0 0.0
        %396 = vmatpush1.msra.mxu0 0.0
        %397 = vmatprep.subr.mxu0 0.0
        %398 = vmatpush1.msra.mxu0 0.0
        %399 = vmatprep.subr.mxu0 0.0
        %400 = vmatpush1.msra.mxu0 0.0
        %401 = vmatprep.subr.mxu0 0.0
        %402 = vmatpush1.msra.mxu0 0.0
        %403 = vmatprep.subr.mxu0 0.0
        %404 = vmatpush1.msra.mxu0 0.0
        %405 = vmatprep.mubr.f32.mxu0 0.0
        %406 = vmatmul.mubr.f32.gmra.mrb[0].mxu0 %v318
        %v407 = vpop.f32.mrb[0].mxu0
        %v408 = vadd.f32 %v314, %v407
        %v409 = vpop.f32.mrb[0].mxu0
        %410 = vmatprep.mubr.f32.mxu0 0.0
        %411 = vmatmul.mubr.f32.gmra.mrb[0].mxu0 %v321
        %v412 = vpop.f32.mrb[0].mxu0
        %v413 = vadd.f32 %v314, %v412
        %v414 = vpop.f32.mrb[0].mxu0
        %415 = vmatprep.mubr.f32.mxu0 0.0
        %416 = vmatmul.mubr.f32.gmra.mrb[0].mxu0 %v324
        %v417 = vpop.f32.mrb[0].mxu0
        %v418 = vadd.f32 %v314, %v417
        %v419 = vpop.f32.mrb[0].mxu0
        %420 = vmatprep.mubr.f32.mxu0 0.0
        %421 = vmatmul.mubr.f32.gmra.mrb[0].mxu0 %v327
        %v422 = vpop.f32.mrb[0].mxu0
        %v423 = vadd.f32 %v314, %v422
        %v424 = vpop.f32.mrb[0].mxu0
        %425 = vmatprep.mubr.f32.mxu0 0.0
        %426 = vmatmul.mubr.f32.gmra.mrb[0].mxu0 %v330
        %v427 = vpop.f32.mrb[0].mxu0
        %v428 = vadd.f32 %v314, %v427
        %v429 = vpop.f32.mrb[0].mxu0
        %430 = vmatprep.mubr.f32.mxu0 0.0
        %431 = vmatmul.mubr.f32.gmra.mrb[0].mxu0 %v333
        %v432 = vpop.f32.mrb[0].mxu0
        %v433 = vadd.f32 %v314, %v432
        %v434 = vpop.f32.mrb[0].mxu0
        %435 = vmatprep.mubr.f32.mxu0 0.0
        %436 = vmatmul.mubr.f32.gmra.mrb[0].mxu0 %v336
        %v437 = vpop.f32.mrb[0].mxu0
        %v438 = vadd.f32 %v314, %v437
        %v439 = vpop.f32.mrb[0].mxu0
        %440 = vmatprep.mubr.f32.mxu0 0.0
        %441 = vmatmul.mubr.f32.gmra.mrb[0].mxu0 %v339
        %v442 = vpop.f32.mrb[0].mxu0
        %v443 = vadd.f32 %v314, %v442
        %v444 = vpop.f32.mrb[0].mxu0
        %445 = vdwg.mxu0
        %446 = vst [vmem:[#allocation4] sm:$0xff] %v408
        %447 = vst [vmem:[#allocation4 + $0x8] sm:$0xff] %v413
        %448 = vst [vmem:[#allocation4 + $0x10] sm:$0xff] %v418
        %449 = vst [vmem:[#allocation4 + $0x18] sm:$0xff] %v423
        %450 = vst [vmem:[#allocation4 + $0x20] sm:$0xff] %v428
        %451 = vst [vmem:[#allocation4 + $0x28] sm:$0xff] %v433
        %452 = vst [vmem:[#allocation4 + $0x30] sm:$0xff] %v438
        %453 = vst [vmem:[#allocation4 + $0x38] sm:$0xff] %v443
        %v454 = vld [vmem:[%s286] sm:$0xff]
        %v455 = vld [vmem:[%s286 + $0x8] sm:$0xff]
        %v456 = vld [vmem:[%s286 + $0x10] sm:$0xff]
        %v457 = vld [vmem:[%s286 + $0x18] sm:$0xff]
        %s458 = smul.u32 %s23, 2
        %s459 = ssub.s32 1, %s458
        %s460 = smul.u32 %s22, %s459
        %s461 = sadd.s32 %s23, %s460
        %s462 = smul.u32 %s22, 7
        %s463 = smul.u32 %s461, 8
        %s464 = sadd.s32 %s463, %s462
        %s465 = smul.u32 %s22, 56
        %s466 = scalar_lea.vmem [#allocation4], %s465
        %v467 = vld [vmem:[%s466] sm:$0xff]
        %v468 = vld [vmem:[#allocation2] sm:$0xff]
        %v470 = vsel %vm316, %v468, 0
        %472 = vmatprep.subr.mxu0 0.0
        %473 = vmatpush1.msra.mxu0 %v454
        %474 = vmatprep.subr.mxu0 0.0
        %475 = vmatpush1.msra.mxu0 %v455
        %476 = vmatprep.subr.mxu0 0.0
        %477 = vmatpush1.msra.mxu0 %v456
        %478 = vmatprep.subr.mxu0 0.0
        %479 = vmatpush1.msra.mxu0 %v457
        %480 = vmatprep.subr.mxu0 0.0
        %481 = vmatpush1.msra.mxu0 0.0
        %482 = vmatprep.subr.mxu0 0.0
        %483 = vmatpush1.msra.mxu0 0.0
        %484 = vmatprep.subr.mxu0 0.0
        %485 = vmatpush1.msra.mxu0 0.0
        %486 = vmatprep.subr.mxu0 0.0
        %487 = vmatpush1.msra.mxu0 0.0
        %488 = vmatprep.subr.mxu0 0.0
        %489 = vmatpush1.msra.mxu0 0.0
        %490 = vmatprep.subr.mxu0 0.0
        %491 = vmatpush1.msra.mxu0 0.0
        %492 = vmatprep.subr.mxu0 0.0
        %493 = vmatpush1.msra.mxu0 0.0
        %494 = vmatprep.subr.mxu0 0.0
        %495 = vmatpush1.msra.mxu0 0.0
        %496 = vmatprep.subr.mxu0 0.0
        %497 = vmatpush1.msra.mxu0 0.0
        %498 = vmatprep.subr.mxu0 0.0
        %499 = vmatpush1.msra.mxu0 0.0
        %500 = vmatprep.subr.mxu0 0.0
        %501 = vmatpush1.msra.mxu0 0.0
        %502 = vmatprep.subr.mxu0 0.0
        %503 = vmatpush1.msra.mxu0 0.0
        %504 = vmatprep.subr.mxu0 0.0
        %505 = vmatpush1.msra.mxu0 0.0
        %506 = vmatprep.subr.mxu0 0.0
        %507 = vmatpush1.msra.mxu0 0.0
        %508 = vmatprep.subr.mxu0 0.0
        %509 = vmatpush1.msra.mxu0 0.0
        %510 = vmatprep.subr.mxu0 0.0
        %511 = vmatpush1.msra.mxu0 0.0
        %512 = vmatprep.subr.mxu0 0.0
        %513 = vmatpush1.msra.mxu0 0.0
        %514 = vmatprep.subr.mxu0 0.0
        %515 = vmatpush1.msra.mxu0 0.0
        %516 = vmatprep.subr.mxu0 0.0
        %517 = vmatpush1.msra.mxu0 0.0
        %518 = vmatprep.subr.mxu0 0.0
        %519 = vmatpush1.msra.mxu0 0.0
        %520 = vmatprep.subr.mxu0 0.0
        %521 = vmatpush1.msra.mxu0 0.0
        %522 = vmatprep.subr.mxu0 0.0
        %523 = vmatpush1.msra.mxu0 0.0
        %524 = vmatprep.subr.mxu0 0.0
        %525 = vmatpush1.msra.mxu0 0.0
        %526 = vmatprep.subr.mxu0 0.0
        %527 = vmatpush1.msra.mxu0 0.0
        %528 = vmatprep.subr.mxu0 0.0
        %529 = vmatpush1.msra.mxu0 0.0
        %530 = vmatprep.subr.mxu0 0.0
        %531 = vmatpush1.msra.mxu0 0.0
        %532 = vmatprep.subr.mxu0 0.0
        %533 = vmatpush1.msra.mxu0 0.0
        %534 = vmatprep.subr.mxu0 0.0
        %535 = vmatpush1.msra.mxu0 0.0
        %536 = vmatprep.mubr.f32.mxu0 0.0
        %537 = vmatmul.mubr.f32.gmra.mrb[0].mxu0 %v470
        %v538 = vpop.f32.mrb[0].mxu0
        %v539 = vadd.f32 0.0, %v538
        %v540 = vpop.f32.mrb[0].mxu0
        %541 = vdwg.mxu0
        %v542 = vadd.f32 %v467, %v539
        %v543 = vxor.u32 %v542, 2147483648
        %v544 = vmul.f32 %v543, 1.442695
        %v545 = vpow.pop %v544
        %v546 = vadd.f32 %v545, 1.0
        %v547 = vrcp.pop %v546
        %v548 = vmul.f32 1.0, %v547
        %v549 = vtanh.pop %v542
        %v550 = vld [vmem:[#allocation3] sm:$0xff]
        %552 = vrot.lane.b32.xlu0 %v550, 32
        %v553 = vpop.permute.xlu0 %552
        %v555 = vmul.f32 %v548, %v553
        %557 = vrot.lane.b32.xlu0 %v549, 64
        %v558 = vpop.permute.xlu0 %557
        %v560 = vmul.f32 %v548, %v558
        %562 = vrot.lane.b32.xlu0 %v560, 32
        %v563 = vpop.permute.xlu0 %562
        %v565 = vadd.f32 %v555, %v563
        %v566 = vtanh.pop %v565
        %568 = vrot.lane.b32.xlu0 %v566, 64
        %v569 = vpop.permute.xlu0 %568
        %v571 = vmul.f32 %v548, %v569
        %p572 = scmp.lt.s32.totalorder %s464, 16
        %s573 = scalar_select %p572, 1, 0
        %v574 = vstv %s573
        %vm575 = vcmp.eq.s32.totalorder %v574, 1
        %576 = vrot.lane.b32.xlu0 %v468, 96
        %v577 = vpop.permute.xlu0 %576
        %v579 = vsel %vm575, %v571, %v577
        %581 = vrot.lane.b32.xlu0 %v579, 32
        %v582 = vpop.permute.xlu0 %581
        %584 = vst.msk [vmem:[#allocation2] sm:$0xff] %vm316, %v582
        %v585 = vld [vmem:[#allocation3] sm:$0xff]
        %587 = vrot.lane.b32.xlu0 %v585, 32
        %v588 = vpop.permute.xlu0 %587
        %v590 = vsel %vm575, %v565, %v588
        %592 = vrot.lane.b32.xlu0 %v590, 96
        %v593 = vpop.permute.xlu0 %592
        %595 = vst.msk [vmem:[#allocation3] sm:$0xff] %vm316, %v593
        %s596 = smul.u32 %s22, 5
        %s597 = sadd.s32 %s596, 1
        %s598 = sadd.s32 %s463, %s597
        %s599 = smul.u32 %s597, 8
        %s600 = scalar_lea.vmem [#allocation4], %s599
        %v601 = vld [vmem:[%s600] sm:$0xff]
        %v602 = vld [vmem:[#allocation2] sm:$0xff]
        %v604 = vsel %vm316, %v602, 0
        %606 = vmatprep.subr.mxu0 0.0
        %607 = vmatpush1.msra.mxu0 %v454
        %608 = vmatprep.subr.mxu0 0.0
        %609 = vmatpush1.msra.mxu0 %v455
        %610 = vmatprep.subr.mxu0 0.0
        %611 = vmatpush1.msra.mxu0 %v456
        %612 = vmatprep.subr.mxu0 0.0
        %613 = vmatpush1.msra.mxu0 %v457
        %614 = vmatprep.subr.mxu0 0.0
        %615 = vmatpush1.msra.mxu0 0.0
        %616 = vmatprep.subr.mxu0 0.0
        %617 = vmatpush1.msra.mxu0 0.0
        %618 = vmatprep.subr.mxu0 0.0
        %619 = vmatpush1.msra.mxu0 0.0
        %620 = vmatprep.subr.mxu0 0.0
        %621 = vmatpush1.msra.mxu0 0.0
        %622 = vmatprep.subr.mxu0 0.0
        %623 = vmatpush1.msra.mxu0 0.0
        %624 = vmatprep.subr.mxu0 0.0
        %625 = vmatpush1.msra.mxu0 0.0
        %626 = vmatprep.subr.mxu0 0.0
        %627 = vmatpush1.msra.mxu0 0.0
        %628 = vmatprep.subr.mxu0 0.0
        %629 = vmatpush1.msra.mxu0 0.0
        %630 = vmatprep.subr.mxu0 0.0
        %631 = vmatpush1.msra.mxu0 0.0
        %632 = vmatprep.subr.mxu0 0.0
        %633 = vmatpush1.msra.mxu0 0.0
        %634 = vmatprep.subr.mxu0 0.0
        %635 = vmatpush1.msra.mxu0 0.0
        %636 = vmatprep.subr.mxu0 0.0
        %637 = vmatpush1.msra.mxu0 0.0
        %638 = vmatprep.subr.mxu0 0.0
        %639 = vmatpush1.msra.mxu0 0.0
        %640 = vmatprep.subr.mxu0 0.0
        %641 = vmatpush1.msra.mxu0 0.0
        %642 = vmatprep.subr.mxu0 0.0
        %643 = vmatpush1.msra.mxu0 0.0
        %644 = vmatprep.subr.mxu0 0.0
        %645 = vmatpush1.msra.mxu0 0.0
        %646 = vmatprep.subr.mxu0 0.0
        %647 = vmatpush1.msra.mxu0 0.0
        %648 = vmatprep.subr.mxu0 0.0
        %649 = vmatpush1.msra.mxu0 0.0
        %650 = vmatprep.subr.mxu0 0.0
        %651 = vmatpush1.msra.mxu0 0.0
        %652 = vmatprep.subr.mxu0 0.0
        %653 = vmatpush1.msra.mxu0 0.0
        %654 = vmatprep.subr.mxu0 0.0
        %655 = vmatpush1.msra.mxu0 0.0
        %656 = vmatprep.subr.mxu0 0.0
        %657 = vmatpush1.msra.mxu0 0.0
        %658 = vmatprep.subr.mxu0 0.0
        %659 = vmatpush1.msra.mxu0 0.0
        %660 = vmatprep.subr.mxu0 0.0
        %661 = vmatpush1.msra.mxu0 0.0
        %662 = vmatprep.subr.mxu0 0.0
        %663 = vmatpush1.msra.mxu0 0.0
        %664 = vmatprep.subr.mxu0 0.0
        %665 = vmatpush1.msra.mxu0 0.0
        %666 = vmatprep.subr.mxu0 0.0
        %667 = vmatpush1.msra.mxu0 0.0
        %668 = vmatprep.subr.mxu0 0.0
        %669 = vmatpush1.msra.mxu0 0.0
        %670 = vmatprep.mubr.f32.mxu0 0.0
        %671 = vmatmul.mubr.f32.gmra.mrb[0].mxu0 %v604
        %v672 = vpop.f32.mrb[0].mxu0
        %v673 = vadd.f32 0.0, %v672
        %v674 = vpop.f32.mrb[0].mxu0
        %675 = vdwg.mxu0
        %v676 = vadd.f32 %v601, %v673
        %v677 = vxor.u32 %v676, 2147483648
        %v678 = vmul.f32 %v677, 1.442695
        %v679 = vpow.pop %v678
        %v680 = vadd.f32 %v679, 1.0
        %v681 = vrcp.pop %v680
        %v682 = vmul.f32 1.0, %v681
        %v683 = vtanh.pop %v676
        %v684 = vld [vmem:[#allocation3] sm:$0xff]
        %686 = vrot.lane.b32.xlu0 %v684, 32
        %v687 = vpop.permute.xlu0 %686
        %v689 = vmul.f32 %v682, %v687
        %691 = vrot.lane.b32.xlu0 %v683, 64
        %v692 = vpop.permute.xlu0 %691
        %v694 = vmul.f32 %v682, %v692
        %696 = vrot.lane.b32.xlu0 %v694, 32
        %v697 = vpop.permute.xlu0 %696
        %v699 = vadd.f32 %v689, %v697
        %v700 = vtanh.pop %v699
        %702 = vrot.lane.b32.xlu0 %v700, 64
        %v703 = vpop.permute.xlu0 %702
        %v705 = vmul.f32 %v682, %v703
        %p706 = scmp.lt.s32.totalorder %s598, 16
        %s707 = scalar_select %p706, 1, 0
        %v708 = vstv %s707
        %vm709 = vcmp.eq.s32.totalorder %v708, 1
        %710 = vrot.lane.b32.xlu0 %v602, 96
        %v711 = vpop.permute.xlu0 %710
        %v713 = vsel %vm709, %v705, %v711
        %715 = vrot.lane.b32.xlu0 %v713, 32
        %v716 = vpop.permute.xlu0 %715
        %718 = vst.msk [vmem:[#allocation2] sm:$0xff] %vm316, %v716
        %v719 = vld [vmem:[#allocation3] sm:$0xff]
        %721 = vrot.lane.b32.xlu0 %v719, 32
        %v722 = vpop.permute.xlu0 %721
        %v724 = vsel %vm709, %v699, %v722
        %726 = vrot.lane.b32.xlu0 %v724, 96
        %v727 = vpop.permute.xlu0 %726
        %729 = vst.msk [vmem:[#allocation3] sm:$0xff] %vm316, %v727
        %s730 = smul.u32 %s22, 3
        %s731 = sadd.s32 %s730, 2
        %s732 = sadd.s32 %s463, %s731
        %s733 = smul.u32 %s731, 8
        %s734 = scalar_lea.vmem [#allocation4], %s733
        %v735 = vld [vmem:[%s734] sm:$0xff]
        %v736 = vld [vmem:[#allocation2] sm:$0xff]
        %v738 = vsel %vm316, %v736, 0
        %740 = vmatprep.subr.mxu0 0.0
        %741 = vmatpush1.msra.mxu0 %v454
        %742 = vmatprep.subr.mxu0 0.0
        %743 = vmatpush1.msra.mxu0 %v455
        %744 = vmatprep.subr.mxu0 0.0
        %745 = vmatpush1.msra.mxu0 %v456
        %746 = vmatprep.subr.mxu0 0.0
        %747 = vmatpush1.msra.mxu0 %v457
        %748 = vmatprep.subr.mxu0 0.0
        %749 = vmatpush1.msra.mxu0 0.0
        %750 = vmatprep.subr.mxu0 0.0
        %751 = vmatpush1.msra.mxu0 0.0
        %752 = vmatprep.subr.mxu0 0.0
        %753 = vmatpush1.msra.mxu0 0.0
        %754 = vmatprep.subr.mxu0 0.0
        %755 = vmatpush1.msra.mxu0 0.0
        %756 = vmatprep.subr.mxu0 0.0
        %757 = vmatpush1.msra.mxu0 0.0
        %758 = vmatprep.subr.mxu0 0.0
        %759 = vmatpush1.msra.mxu0 0.0
        %760 = vmatprep.subr.mxu0 0.0
        %761 = vmatpush1.msra.mxu0 0.0
        %762 = vmatprep.subr.mxu0 0.0
        %763 = vmatpush1.msra.mxu0 0.0
        %764 = vmatprep.subr.mxu0 0.0
        %765 = vmatpush1.msra.mxu0 0.0
        %766 = vmatprep.subr.mxu0 0.0
        %767 = vmatpush1.msra.mxu0 0.0
        %768 = vmatprep.subr.mxu0 0.0
        %769 = vmatpush1.msra.mxu0 0.0
        %770 = vmatprep.subr.mxu0 0.0
        %771 = vmatpush1.msra.mxu0 0.0
        %772 = vmatprep.subr.mxu0 0.0
        %773 = vmatpush1.msra.mxu0 0.0
        %774 = vmatprep.subr.mxu0 0.0
        %775 = vmatpush1.msra.mxu0 0.0
        %776 = vmatprep.subr.mxu0 0.0
        %777 = vmatpush1.msra.mxu0 0.0
        %778 = vmatprep.subr.mxu0 0.0
        %779 = vmatpush1.msra.mxu0 0.0
        %780 = vmatprep.subr.mxu0 0.0
        %781 = vmatpush1.msra.mxu0 0.0
        %782 = vmatprep.subr.mxu0 0.0
        %783 = vmatpush1.msra.mxu0 0.0
        %784 = vmatprep.subr.mxu0 0.0
        %785 = vmatpush1.msra.mxu0 0.0
        %786 = vmatprep.subr.mxu0 0.0
        %787 = vmatpush1.msra.mxu0 0.0
        %788 = vmatprep.subr.mxu0 0.0
        %789 = vmatpush1.msra.mxu0 0.0
        %790 = vmatprep.subr.mxu0 0.0
        %791 = vmatpush1.msra.mxu0 0.0
        %792 = vmatprep.subr.mxu0 0.0
        %793 = vmatpush1.msra.mxu0 0.0
        %794 = vmatprep.subr.mxu0 0.0
        %795 = vmatpush1.msra.mxu0 0.0
        %796 = vmatprep.subr.mxu0 0.0
        %797 = vmatpush1.msra.mxu0 0.0
        %798 = vmatprep.subr.mxu0 0.0
        %799 = vmatpush1.msra.mxu0 0.0
        %800 = vmatprep.subr.mxu0 0.0
        %801 = vmatpush1.msra.mxu0 0.0
        %802 = vmatprep.subr.mxu0 0.0
        %803 = vmatpush1.msra.mxu0 0.0
        %804 = vmatprep.mubr.f32.mxu0 0.0
        %805 = vmatmul.mubr.f32.gmra.mrb[0].mxu0 %v738
        %v806 = vpop.f32.mrb[0].mxu0
        %v807 = vadd.f32 0.0, %v806
        %v808 = vpop.f32.mrb[0].mxu0
        %809 = vdwg.mxu0
        %v810 = vadd.f32 %v735, %v807
        %v811 = vxor.u32 %v810, 2147483648
        %v812 = vmul.f32 %v811, 1.442695
        %v813 = vpow.pop %v812
        %v814 = vadd.f32 %v813, 1.0
        %v815 = vrcp.pop %v814
        %v816 = vmul.f32 1.0, %v815
        %v817 = vtanh.pop %v810
        %v818 = vld [vmem:[#allocation3] sm:$0xff]
        %820 = vrot.lane.b32.xlu0 %v818, 32
        %v821 = vpop.permute.xlu0 %820
        %v823 = vmul.f32 %v816, %v821
        %825 = vrot.lane.b32.xlu0 %v817, 64
        %v826 = vpop.permute.xlu0 %825
        %v828 = vmul.f32 %v816, %v826
        %830 = vrot.lane.b32.xlu0 %v828, 32
        %v831 = vpop.permute.xlu0 %830
        %v833 = vadd.f32 %v823, %v831
        %v834 = vtanh.pop %v833
        %836 = vrot.lane.b32.xlu0 %v834, 64
        %v837 = vpop.permute.xlu0 %836
        %v839 = vmul.f32 %v816, %v837
        %p840 = scmp.lt.s32.totalorder %s732, 16
        %s841 = scalar_select %p840, 1, 0
        %v842 = vstv %s841
        %vm843 = vcmp.eq.s32.totalorder %v842, 1
        %844 = vrot.lane.b32.xlu0 %v736, 96
        %v845 = vpop.permute.xlu0 %844
        %v847 = vsel %vm843, %v839, %v845
        %849 = vrot.lane.b32.xlu0 %v847, 32
        %v850 = vpop.permute.xlu0 %849
        %852 = vst.msk [vmem:[#allocation2] sm:$0xff] %vm316, %v850
        %v853 = vld [vmem:[#allocation3] sm:$0xff]
        %855 = vrot.lane.b32.xlu0 %v853, 32
        %v856 = vpop.permute.xlu0 %855
        %v858 = vsel %vm843, %v833, %v856
        %860 = vrot.lane.b32.xlu0 %v858, 96
        %v861 = vpop.permute.xlu0 %860
        %863 = vst.msk [vmem:[#allocation3] sm:$0xff] %vm316, %v861
        %s864 = sadd.s32 %s22, 3
        %s865 = sadd.s32 %s463, %s864
        %s866 = smul.u32 %s864, 8
        %s867 = scalar_lea.vmem [#allocation4], %s866
        %v868 = vld [vmem:[%s867] sm:$0xff]
        %v869 = vld [vmem:[#allocation2] sm:$0xff]
        %v871 = vsel %vm316, %v869, 0
        %873 = vmatprep.subr.mxu0 0.0
        %874 = vmatpush1.msra.mxu0 %v454
        %875 = vmatprep.subr.mxu0 0.0
        %876 = vmatpush1.msra.mxu0 %v455
        %877 = vmatprep.subr.mxu0 0.0
        %878 = vmatpush1.msra.mxu0 %v456
        %879 = vmatprep.subr.mxu0 0.0
        %880 = vmatpush1.msra.mxu0 %v457
        %881 = vmatprep.subr.mxu0 0.0
        %882 = vmatpush1.msra.mxu0 0.0
        %883 = vmatprep.subr.mxu0 0.0
        %884 = vmatpush1.msra.mxu0 0.0
        %885 = vmatprep.subr.mxu0 0.0
        %886 = vmatpush1.msra.mxu0 0.0
        %887 = vmatprep.subr.mxu0 0.0
        %888 = vmatpush1.msra.mxu0 0.0
        %889 = vmatprep.subr.mxu0 0.0
        %890 = vmatpush1.msra.mxu0 0.0
        %891 = vmatprep.subr.mxu0 0.0
        %892 = vmatpush1.msra.mxu0 0.0
        %893 = vmatprep.subr.mxu0 0.0
        %894 = vmatpush1.msra.mxu0 0.0
        %895 = vmatprep.subr.mxu0 0.0
        %896 = vmatpush1.msra.mxu0 0.0
        %897 = vmatprep.subr.mxu0 0.0
        %898 = vmatpush1.msra.mxu0 0.0
        %899 = vmatprep.subr.mxu0 0.0
        %900 = vmatpush1.msra.mxu0 0.0
        %901 = vmatprep.subr.mxu0 0.0
        %902 = vmatpush1.msra.mxu0 0.0
        %903 = vmatprep.subr.mxu0 0.0
        %904 = vmatpush1.msra.mxu0 0.0
        %905 = vmatprep.subr.mxu0 0.0
        %906 = vmatpush1.msra.mxu0 0.0
        %907 = vmatprep.subr.mxu0 0.0
        %908 = vmatpush1.msra.mxu0 0.0
        %909 = vmatprep.subr.mxu0 0.0
        %910 = vmatpush1.msra.mxu0 0.0
        %911 = vmatprep.subr.mxu0 0.0
        %912 = vmatpush1.msra.mxu0 0.0
        %913 = vmatprep.subr.mxu0 0.0
        %914 = vmatpush1.msra.mxu0 0.0
        %915 = vmatprep.subr.mxu0 0.0
        %916 = vmatpush1.msra.mxu0 0.0
        %917 = vmatprep.subr.mxu0 0.0
        %918 = vmatpush1.msra.mxu0 0.0
        %919 = vmatprep.subr.mxu0 0.0
        %920 = vmatpush1.msra.mxu0 0.0
        %921 = vmatprep.subr.mxu0 0.0
        %922 = vmatpush1.msra.mxu0 0.0
        %923 = vmatprep.subr.mxu0 0.0
        %924 = vmatpush1.msra.mxu0 0.0
        %925 = vmatprep.subr.mxu0 0.0
        %926 = vmatpush1.msra.mxu0 0.0
        %927 = vmatprep.subr.mxu0 0.0
        %928 = vmatpush1.msra.mxu0 0.0
        %929 = vmatprep.subr.mxu0 0.0
        %930 = vmatpush1.msra.mxu0 0.0
        %931 = vmatprep.subr.mxu0 0.0
        %932 = vmatpush1.msra.mxu0 0.0
        %933 = vmatprep.subr.mxu0 0.0
        %934 = vmatpush1.msra.mxu0 0.0
        %935 = vmatprep.subr.mxu0 0.0
        %936 = vmatpush1.msra.mxu0 0.0
        %937 = vmatprep.mubr.f32.mxu0 0.0
        %938 = vmatmul.mubr.f32.gmra.mrb[0].mxu0 %v871
        %v939 = vpop.f32.mrb[0].mxu0
        %v940 = vadd.f32 0.0, %v939
        %v941 = vpop.f32.mrb[0].mxu0
        %942 = vdwg.mxu0
        %v943 = vadd.f32 %v868, %v940
        %v944 = vxor.u32 %v943, 2147483648
        %v945 = vmul.f32 %v944, 1.442695
        %v946 = vpow.pop %v945
        %v947 = vadd.f32 %v946, 1.0
        %v948 = vrcp.pop %v947
        %v949 = vmul.f32 1.0, %v948
        %v950 = vtanh.pop %v943
        %v951 = vld [vmem:[#allocation3] sm:$0xff]
        %953 = vrot.lane.b32.xlu0 %v951, 32
        %v954 = vpop.permute.xlu0 %953
        %v956 = vmul.f32 %v949, %v954
        %958 = vrot.lane.b32.xlu0 %v950, 64
        %v959 = vpop.permute.xlu0 %958
        %v961 = vmul.f32 %v949, %v959
        %963 = vrot.lane.b32.xlu0 %v961, 32
        %v964 = vpop.permute.xlu0 %963
        %v966 = vadd.f32 %v956, %v964
        %v967 = vtanh.pop %v966
        %969 = vrot.lane.b32.xlu0 %v967, 64
        %v970 = vpop.permute.xlu0 %969
        %v972 = vmul.f32 %v949, %v970
        %p973 = scmp.lt.s32.totalorder %s865, 16
        %s974 = scalar_select %p973, 1, 0
        %v975 = vstv %s974
        %vm976 = vcmp.eq.s32.totalorder %v975, 1
        %977 = vrot.lane.b32.xlu0 %v869, 96
        %v978 = vpop.permute.xlu0 %977
        %v980 = vsel %vm976, %v972, %v978
        %982 = vrot.lane.b32.xlu0 %v980, 32
        %v983 = vpop.permute.xlu0 %982
        %985 = vst.msk [vmem:[#allocation2] sm:$0xff] %vm316, %v983
        %v986 = vld [vmem:[#allocation3] sm:$0xff]
        %988 = vrot.lane.b32.xlu0 %v986, 32
        %v989 = vpop.permute.xlu0 %988
        %v991 = vsel %vm976, %v966, %v989
        %993 = vrot.lane.b32.xlu0 %v991, 96
        %v994 = vpop.permute.xlu0 %993
        %996 = vst.msk [vmem:[#allocation3] sm:$0xff] %vm316, %v994
        %s997 = ssub.s32 4, %s22
        %s998 = sadd.s32 %s463, %s997
        %s999 = smul.u32 %s997, 8
        %s1000 = scalar_lea.vmem [#allocation4], %s999
        %v1001 = vld [vmem:[%s1000] sm:$0xff]
        %v1002 = vld [vmem:[#allocation2] sm:$0xff]
        %v1004 = vsel %vm316, %v1002, 0
        %1006 = vmatprep.subr.mxu0 0.0
        %1007 = vmatpush1.msra.mxu0 %v454
        %1008 = vmatprep.subr.mxu0 0.0
        %1009 = vmatpush1.msra.mxu0 %v455
        %1010 = vmatprep.subr.mxu0 0.0
        %1011 = vmatpush1.msra.mxu0 %v456
        %1012 = vmatprep.subr.mxu0 0.0
        %1013 = vmatpush1.msra.mxu0 %v457
        %1014 = vmatprep.subr.mxu0 0.0
        %1015 = vmatpush1.msra.mxu0 0.0
        %1016 = vmatprep.subr.mxu0 0.0
        %1017 = vmatpush1.msra.mxu0 0.0
        %1018 = vmatprep.subr.mxu0 0.0
        %1019 = vmatpush1.msra.mxu0 0.0
        %1020 = vmatprep.subr.mxu0 0.0
        %1021 = vmatpush1.msra.mxu0 0.0
        %1022 = vmatprep.subr.mxu0 0.0
        %1023 = vmatpush1.msra.mxu0 0.0
        %1024 = vmatprep.subr.mxu0 0.0
        %1025 = vmatpush1.msra.mxu0 0.0
        %1026 = vmatprep.subr.mxu0 0.0
        %1027 = vmatpush1.msra.mxu0 0.0
        %1028 = vmatprep.subr.mxu0 0.0
        %1029 = vmatpush1.msra.mxu0 0.0
        %1030 = vmatprep.subr.mxu0 0.0
        %1031 = vmatpush1.msra.mxu0 0.0
        %1032 = vmatprep.subr.mxu0 0.0
        %1033 = vmatpush1.msra.mxu0 0.0
        %1034 = vmatprep.subr.mxu0 0.0
        %1035 = vmatpush1.msra.mxu0 0.0
        %1036 = vmatprep.subr.mxu0 0.0
        %1037 = vmatpush1.msra.mxu0 0.0
        %1038 = vmatprep.subr.mxu0 0.0
        %1039 = vmatpush1.msra.mxu0 0.0
        %1040 = vmatprep.subr.mxu0 0.0
        %1041 = vmatpush1.msra.mxu0 0.0
        %1042 = vmatprep.subr.mxu0 0.0
        %1043 = vmatpush1.msra.mxu0 0.0
        %1044 = vmatprep.subr.mxu0 0.0
        %1045 = vmatpush1.msra.mxu0 0.0
        %1046 = vmatprep.subr.mxu0 0.0
        %1047 = vmatpush1.msra.mxu0 0.0
        %1048 = vmatprep.subr.mxu0 0.0
        %1049 = vmatpush1.msra.mxu0 0.0
        %1050 = vmatprep.subr.mxu0 0.0
        %1051 = vmatpush1.msra.mxu0 0.0
        %1052 = vmatprep.subr.mxu0 0.0
        %1053 = vmatpush1.msra.mxu0 0.0
        %1054 = vmatprep.subr.mxu0 0.0
        %1055 = vmatpush1.msra.mxu0 0.0
        %1056 = vmatprep.subr.mxu0 0.0
        %1057 = vmatpush1.msra.mxu0 0.0
        %1058 = vmatprep.subr.mxu0 0.0
        %1059 = vmatpush1.msra.mxu0 0.0
        %1060 = vmatprep.subr.mxu0 0.0
        %1061 = vmatpush1.msra.mxu0 0.0
        %1062 = vmatprep.subr.mxu0 0.0
        %1063 = vmatpush1.msra.mxu0 0.0
        %1064 = vmatprep.subr.mxu0 0.0
        %1065 = vmatpush1.msra.mxu0 0.0
        %1066 = vmatprep.subr.mxu0 0.0
        %1067 = vmatpush1.msra.mxu0 0.0
        %1068 = vmatprep.subr.mxu0 0.0
        %1069 = vmatpush1.msra.mxu0 0.0
        %1070 = vmatprep.mubr.f32.mxu0 0.0
        %1071 = vmatmul.mubr.f32.gmra.mrb[0].mxu0 %v1004
        %v1072 = vpop.f32.mrb[0].mxu0
        %v1073 = vadd.f32 0.0, %v1072
        %v1074 = vpop.f32.mrb[0].mxu0
        %1075 = vdwg.mxu0
        %v1076 = vadd.f32 %v1001, %v1073
        %v1077 = vxor.u32 %v1076, 2147483648
        %v1078 = vmul.f32 %v1077, 1.442695
        %v1079 = vpow.pop %v1078
        %v1080 = vadd.f32 %v1079, 1.0
        %v1081 = vrcp.pop %v1080
        %v1082 = vmul.f32 1.0, %v1081
        %v1083 = vtanh.pop %v1076
        %v1084 = vld [vmem:[#allocation3] sm:$0xff]
        %1086 = vrot.lane.b32.xlu0 %v1084, 32
        %v1087 = vpop.permute.xlu0 %1086
        %v1089 = vmul.f32 %v1082, %v1087
        %1091 = vrot.lane.b32.xlu0 %v1083, 64
        %v1092 = vpop.permute.xlu0 %1091
        %v1094 = vmul.f32 %v1082, %v1092
        %1096 = vrot.lane.b32.xlu0 %v1094, 32
        %v1097 = vpop.permute.xlu0 %1096
        %v1099 = vadd.f32 %v1089, %v1097
        %v1100 = vtanh.pop %v1099
        %1102 = vrot.lane.b32.xlu0 %v1100, 64
        %v1103 = vpop.permute.xlu0 %1102
        %v1105 = vmul.f32 %v1082, %v1103
        %p1106 = scmp.lt.s32.totalorder %s998, 16
        %s1107 = scalar_select %p1106, 1, 0
        %v1108 = vstv %s1107
        %vm1109 = vcmp.eq.s32.totalorder %v1108, 1
        %1110 = vrot.lane.b32.xlu0 %v1002, 96
        %v1111 = vpop.permute.xlu0 %1110
        %v1113 = vsel %vm1109, %v1105, %v1111
        %1115 = vrot.lane.b32.xlu0 %v1113, 32
        %v1116 = vpop.permute.xlu0 %1115
        %1118 = vst.msk [vmem:[#allocation2] sm:$0xff] %vm316, %v1116
        %v1119 = vld [vmem:[#allocation3] sm:$0xff]
        %1121 = vrot.lane.b32.xlu0 %v1119, 32
        %v1122 = vpop.permute.xlu0 %1121
        %v1124 = vsel %vm1109, %v1099, %v1122
        %1126 = vrot.lane.b32.xlu0 %v1124, 96
        %v1127 = vpop.permute.xlu0 %1126
        %1129 = vst.msk [vmem:[#allocation3] sm:$0xff] %vm316, %v1127
        %s1130 = smul.u32 %s22, 4294967293
        %s1131 = sadd.s32 %s1130, 5
        %s1132 = sadd.s32 %s463, %s1131
        %s1133 = smul.u32 %s1131, 8
        %s1134 = scalar_lea.vmem [#allocation4], %s1133
        %v1135 = vld [vmem:[%s1134] sm:$0xff]
        %v1136 = vld [vmem:[#allocation2] sm:$0xff]
        %v1138 = vsel %vm316, %v1136, 0
        %1140 = vmatprep.subr.mxu0 0.0
        %1141 = vmatpush1.msra.mxu0 %v454
        %1142 = vmatprep.subr.mxu0 0.0
        %1143 = vmatpush1.msra.mxu0 %v455
        %1144 = vmatprep.subr.mxu0 0.0
        %1145 = vmatpush1.msra.mxu0 %v456
        %1146 = vmatprep.subr.mxu0 0.0
        %1147 = vmatpush1.msra.mxu0 %v457
        %1148 = vmatprep.subr.mxu0 0.0
        %1149 = vmatpush1.msra.mxu0 0.0
        %1150 = vmatprep.subr.mxu0 0.0
        %1151 = vmatpush1.msra.mxu0 0.0
        %1152 = vmatprep.subr.mxu0 0.0
        %1153 = vmatpush1.msra.mxu0 0.0
        %1154 = vmatprep.subr.mxu0 0.0
        %1155 = vmatpush1.msra.mxu0 0.0
        %1156 = vmatprep.subr.mxu0 0.0
        %1157 = vmatpush1.msra.mxu0 0.0
        %1158 = vmatprep.subr.mxu0 0.0
        %1159 = vmatpush1.msra.mxu0 0.0
        %1160 = vmatprep.subr.mxu0 0.0
        %1161 = vmatpush1.msra.mxu0 0.0
        %1162 = vmatprep.subr.mxu0 0.0
        %1163 = vmatpush1.msra.mxu0 0.0
        %1164 = vmatprep.subr.mxu0 0.0
        %1165 = vmatpush1.msra.mxu0 0.0
        %1166 = vmatprep.subr.mxu0 0.0
        %1167 = vmatpush1.msra.mxu0 0.0
        %1168 = vmatprep.subr.mxu0 0.0
        %1169 = vmatpush1.msra.mxu0 0.0
        %1170 = vmatprep.subr.mxu0 0.0
        %1171 = vmatpush1.msra.mxu0 0.0
        %1172 = vmatprep.subr.mxu0 0.0
        %1173 = vmatpush1.msra.mxu0 0.0
        %1174 = vmatprep.subr.mxu0 0.0
        %1175 = vmatpush1.msra.mxu0 0.0
        %1176 = vmatprep.subr.mxu0 0.0
        %1177 = vmatpush1.msra.mxu0 0.0
        %1178 = vmatprep.subr.mxu0 0.0
        %1179 = vmatpush1.msra.mxu0 0.0
        %1180 = vmatprep.subr.mxu0 0.0
        %1181 = vmatpush1.msra.mxu0 0.0
        %1182 = vmatprep.subr.mxu0 0.0
        %1183 = vmatpush1.msra.mxu0 0.0
        %1184 = vmatprep.subr.mxu0 0.0
        %1185 = vmatpush1.msra.mxu0 0.0
        %1186 = vmatprep.subr.mxu0 0.0
        %1187 = vmatpush1.msra.mxu0 0.0
        %1188 = vmatprep.subr.mxu0 0.0
        %1189 = vmatpush1.msra.mxu0 0.0
        %1190 = vmatprep.subr.mxu0 0.0
        %1191 = vmatpush1.msra.mxu0 0.0
        %1192 = vmatprep.subr.mxu0 0.0
        %1193 = vmatpush1.msra.mxu0 0.0
        %1194 = vmatprep.subr.mxu0 0.0
        %1195 = vmatpush1.msra.mxu0 0.0
        %1196 = vmatprep.subr.mxu0 0.0
        %1197 = vmatpush1.msra.mxu0 0.0
        %1198 = vmatprep.subr.mxu0 0.0
        %1199 = vmatpush1.msra.mxu0 0.0
        %1200 = vmatprep.subr.mxu0 0.0
        %1201 = vmatpush1.msra.mxu0 0.0
        %1202 = vmatprep.subr.mxu0 0.0
        %1203 = vmatpush1.msra.mxu0 0.0
        %1204 = vmatprep.mubr.f32.mxu0 0.0
        %1205 = vmatmul.mubr.f32.gmra.mrb[0].mxu0 %v1138
        %v1206 = vpop.f32.mrb[0].mxu0
        %v1207 = vadd.f32 0.0, %v1206
        %v1208 = vpop.f32.mrb[0].mxu0
        %1209 = vdwg.mxu0
        %v1210 = vadd.f32 %v1135, %v1207
        %v1211 = vxor.u32 %v1210, 2147483648
        %v1212 = vmul.f32 %v1211, 1.442695
        %v1213 = vpow.pop %v1212
        %v1214 = vadd.f32 %v1213, 1.0
        %v1215 = vrcp.pop %v1214
        %v1216 = vmul.f32 1.0, %v1215
        %v1217 = vtanh.pop %v1210
        %v1218 = vld [vmem:[#allocation3] sm:$0xff]
        %1220 = vrot.lane.b32.xlu0 %v1218, 32
        %v1221 = vpop.permute.xlu0 %1220
        %v1223 = vmul.f32 %v1216, %v1221
        %1225 = vrot.lane.b32.xlu0 %v1217, 64
        %v1226 = vpop.permute.xlu0 %1225
        %v1228 = vmul.f32 %v1216, %v1226
        %1230 = vrot.lane.b32.xlu0 %v1228, 32
        %v1231 = vpop.permute.xlu0 %1230
        %v1233 = vadd.f32 %v1223, %v1231
        %v1234 = vtanh.pop %v1233
        %1236 = vrot.lane.b32.xlu0 %v1234, 64
        %v1237 = vpop.permute.xlu0 %1236
        %v1239 = vmul.f32 %v1216, %v1237
        %p1240 = scmp.lt.s32.totalorder %s1132, 16
        %s1241 = scalar_select %p1240, 1, 0
        %v1242 = vstv %s1241
        %vm1243 = vcmp.eq.s32.totalorder %v1242, 1
        %1244 = vrot.lane.b32.xlu0 %v1136, 96
        %v1245 = vpop.permute.xlu0 %1244
        %v1247 = vsel %vm1243, %v1239, %v1245
        %1249 = vrot.lane.b32.xlu0 %v1247, 32
        %v1250 = vpop.permute.xlu0 %1249
        %1252 = vst.msk [vmem:[#allocation2] sm:$0xff] %vm316, %v1250
        %v1253 = vld [vmem:[#allocation3] sm:$0xff]
        %1255 = vrot.lane.b32.xlu0 %v1253, 32
        %v1256 = vpop.permute.xlu0 %1255
        %v1258 = vsel %vm1243, %v1233, %v1256
        %1260 = vrot.lane.b32.xlu0 %v1258, 96
        %v1261 = vpop.permute.xlu0 %1260
        %1263 = vst.msk [vmem:[#allocation3] sm:$0xff] %vm316, %v1261
        %s1264 = smul.u32 %s22, 4294967291
        %s1265 = sadd.s32 %s1264, 6
        %s1266 = sadd.s32 %s463, %s1265
        %s1267 = smul.u32 %s1265, 8
        %s1268 = scalar_lea.vmem [#allocation4], %s1267
        %v1269 = vld [vmem:[%s1268] sm:$0xff]
        %v1270 = vld [vmem:[#allocation2] sm:$0xff]
        %v1272 = vsel %vm316, %v1270, 0
        %1274 = vmatprep.subr.mxu0 0.0
        %1275 = vmatpush1.msra.mxu0 %v454
        %1276 = vmatprep.subr.mxu0 0.0
        %1277 = vmatpush1.msra.mxu0 %v455
        %1278 = vmatprep.subr.mxu0 0.0
        %1279 = vmatpush1.msra.mxu0 %v456
        %1280 = vmatprep.subr.mxu0 0.0
        %1281 = vmatpush1.msra.mxu0 %v457
        %1282 = vmatprep.subr.mxu0 0.0
        %1283 = vmatpush1.msra.mxu0 0.0
        %1284 = vmatprep.subr.mxu0 0.0
        %1285 = vmatpush1.msra.mxu0 0.0
        %1286 = vmatprep.subr.mxu0 0.0
        %1287 = vmatpush1.msra.mxu0 0.0
        %1288 = vmatprep.subr.mxu0 0.0
        %1289 = vmatpush1.msra.mxu0 0.0
        %1290 = vmatprep.subr.mxu0 0.0
        %1291 = vmatpush1.msra.mxu0 0.0
        %1292 = vmatprep.subr.mxu0 0.0
        %1293 = vmatpush1.msra.mxu0 0.0
        %1294 = vmatprep.subr.mxu0 0.0
        %1295 = vmatpush1.msra.mxu0 0.0
        %1296 = vmatprep.subr.mxu0 0.0
        %1297 = vmatpush1.msra.mxu0 0.0
        %1298 = vmatprep.subr.mxu0 0.0
        %1299 = vmatpush1.msra.mxu0 0.0
        %1300 = vmatprep.subr.mxu0 0.0
        %1301 = vmatpush1.msra.mxu0 0.0
        %1302 = vmatprep.subr.mxu0 0.0
        %1303 = vmatpush1.msra.mxu0 0.0
        %1304 = vmatprep.subr.mxu0 0.0
        %1305 = vmatpush1.msra.mxu0 0.0
        %1306 = vmatprep.subr.mxu0 0.0
        %1307 = vmatpush1.msra.mxu0 0.0
        %1308 = vmatprep.subr.mxu0 0.0
        %1309 = vmatpush1.msra.mxu0 0.0
        %1310 = vmatprep.subr.mxu0 0.0
        %1311 = vmatpush1.msra.mxu0 0.0
        %1312 = vmatprep.subr.mxu0 0.0
        %1313 = vmatpush1.msra.mxu0 0.0
        %1314 = vmatprep.subr.mxu0 0.0
        %1315 = vmatpush1.msra.mxu0 0.0
        %1316 = vmatprep.subr.mxu0 0.0
        %1317 = vmatpush1.msra.mxu0 0.0
        %1318 = vmatprep.subr.mxu0 0.0
        %1319 = vmatpush1.msra.mxu0 0.0
        %1320 = vmatprep.subr.mxu0 0.0
        %1321 = vmatpush1.msra.mxu0 0.0
        %1322 = vmatprep.subr.mxu0 0.0
        %1323 = vmatpush1.msra.mxu0 0.0
        %1324 = vmatprep.subr.mxu0 0.0
        %1325 = vmatpush1.msra.mxu0 0.0
        %1326 = vmatprep.subr.mxu0 0.0
        %1327 = vmatpush1.msra.mxu0 0.0
        %1328 = vmatprep.subr.mxu0 0.0
        %1329 = vmatpush1.msra.mxu0 0.0
        %1330 = vmatprep.subr.mxu0 0.0
        %1331 = vmatpush1.msra.mxu0 0.0
        %1332 = vmatprep.subr.mxu0 0.0
        %1333 = vmatpush1.msra.mxu0 0.0
        %1334 = vmatprep.subr.mxu0 0.0
        %1335 = vmatpush1.msra.mxu0 0.0
        %1336 = vmatprep.subr.mxu0 0.0
        %1337 = vmatpush1.msra.mxu0 0.0
        %1338 = vmatprep.mubr.f32.mxu0 0.0
        %1339 = vmatmul.mubr.f32.gmra.mrb[0].mxu0 %v1272
        %v1340 = vpop.f32.mrb[0].mxu0
        %v1341 = vadd.f32 0.0, %v1340
        %v1342 = vpop.f32.mrb[0].mxu0
        %1343 = vdwg.mxu0
        %v1344 = vadd.f32 %v1269, %v1341
        %v1345 = vxor.u32 %v1344, 2147483648
        %v1346 = vmul.f32 %v1345, 1.442695
        %v1347 = vpow.pop %v1346
        %v1348 = vadd.f32 %v1347, 1.0
        %v1349 = vrcp.pop %v1348
        %v1350 = vmul.f32 1.0, %v1349
        %v1351 = vtanh.pop %v1344
        %v1352 = vld [vmem:[#allocation3] sm:$0xff]
        %1354 = vrot.lane.b32.xlu0 %v1352, 32
        %v1355 = vpop.permute.xlu0 %1354
        %v1357 = vmul.f32 %v1350, %v1355
        %1359 = vrot.lane.b32.xlu0 %v1351, 64
        %v1360 = vpop.permute.xlu0 %1359
        %v1362 = vmul.f32 %v1350, %v1360
        %1364 = vrot.lane.b32.xlu0 %v1362, 32
        %v1365 = vpop.permute.xlu0 %1364
        %v1367 = vadd.f32 %v1357, %v1365
        %v1368 = vtanh.pop %v1367
        %1370 = vrot.lane.b32.xlu0 %v1368, 64
        %v1371 = vpop.permute.xlu0 %1370
        %v1373 = vmul.f32 %v1350, %v1371
        %p1374 = scmp.lt.s32.totalorder %s1266, 16
        %s1375 = scalar_select %p1374, 1, 0
        %v1376 = vstv %s1375
        %vm1377 = vcmp.eq.s32.totalorder %v1376, 1
        %1378 = vrot.lane.b32.xlu0 %v1270, 96
        %v1379 = vpop.permute.xlu0 %1378
        %v1381 = vsel %vm1377, %v1373, %v1379
        %1383 = vrot.lane.b32.xlu0 %v1381, 32
        %v1384 = vpop.permute.xlu0 %1383
        %1386 = vst.msk [vmem:[#allocation2] sm:$0xff] %vm316, %v1384
        %v1387 = vld [vmem:[#allocation3] sm:$0xff]
        %1389 = vrot.lane.b32.xlu0 %v1387, 32
        %v1390 = vpop.permute.xlu0 %1389
        %v1392 = vsel %vm1377, %v1367, %v1390
        %1394 = vrot.lane.b32.xlu0 %v1392, 96
        %v1395 = vpop.permute.xlu0 %1394
        %1397 = vst.msk [vmem:[#allocation3] sm:$0xff] %vm316, %v1395
        %s1398 = smul.u32 %s22, 4294967289
        %s1399 = sadd.s32 %s1398, 7
        %s1400 = sadd.s32 %s463, %s1399
        %s1401 = smul.u32 %s1399, 8
        %s1402 = scalar_lea.vmem [#allocation4], %s1401
        %v1403 = vld [vmem:[%s1402] sm:$0xff]
        %v1404 = vld [vmem:[#allocation2] sm:$0xff]
        %v1406 = vsel %vm316, %v1404, 0
        %1408 = vmatprep.subr.mxu0 0.0
        %1409 = vmatpush1.msra.mxu0 %v454
        %1410 = vmatprep.subr.mxu0 0.0
        %1411 = vmatpush1.msra.mxu0 %v455
        %1412 = vmatprep.subr.mxu0 0.0
        %1413 = vmatpush1.msra.mxu0 %v456
        %1414 = vmatprep.subr.mxu0 0.0
        %1415 = vmatpush1.msra.mxu0 %v457
        %1416 = vmatprep.subr.mxu0 0.0
        %1417 = vmatpush1.msra.mxu0 0.0
        %1418 = vmatprep.subr.mxu0 0.0
        %1419 = vmatpush1.msra.mxu0 0.0
        %1420 = vmatprep.subr.mxu0 0.0
        %1421 = vmatpush1.msra.mxu0 0.0
        %1422 = vmatprep.subr.mxu0 0.0
        %1423 = vmatpush1.msra.mxu0 0.0
        %1424 = vmatprep.subr.mxu0 0.0
        %1425 = vmatpush1.msra.mxu0 0.0
        %1426 = vmatprep.subr.mxu0 0.0
        %1427 = vmatpush1.msra.mxu0 0.0
        %1428 = vmatprep.subr.mxu0 0.0
        %1429 = vmatpush1.msra.mxu0 0.0
        %1430 = vmatprep.subr.mxu0 0.0
        %1431 = vmatpush1.msra.mxu0 0.0
        %1432 = vmatprep.subr.mxu0 0.0
        %1433 = vmatpush1.msra.mxu0 0.0
        %1434 = vmatprep.subr.mxu0 0.0
        %1435 = vmatpush1.msra.mxu0 0.0
        %1436 = vmatprep.subr.mxu0 0.0
        %1437 = vmatpush1.msra.mxu0 0.0
        %1438 = vmatprep.subr.mxu0 0.0
        %1439 = vmatpush1.msra.mxu0 0.0
        %1440 = vmatprep.subr.mxu0 0.0
        %1441 = vmatpush1.msra.mxu0 0.0
        %1442 = vmatprep.subr.mxu0 0.0
        %1443 = vmatpush1.msra.mxu0 0.0
        %1444 = vmatprep.subr.mxu0 0.0
        %1445 = vmatpush1.msra.mxu0 0.0
        %1446 = vmatprep.subr.mxu0 0.0
        %1447 = vmatpush1.msra.mxu0 0.0
        %1448 = vmatprep.subr.mxu0 0.0
        %1449 = vmatpush1.msra.mxu0 0.0
        %1450 = vmatprep.subr.mxu0 0.0
        %1451 = vmatpush1.msra.mxu0 0.0
        %1452 = vmatprep.subr.mxu0 0.0
        %1453 = vmatpush1.msra.mxu0 0.0
        %1454 = vmatprep.subr.mxu0 0.0
        %1455 = vmatpush1.msra.mxu0 0.0
        %1456 = vmatprep.subr.mxu0 0.0
        %1457 = vmatpush1.msra.mxu0 0.0
        %1458 = vmatprep.subr.mxu0 0.0
        %1459 = vmatpush1.msra.mxu0 0.0
        %1460 = vmatprep.subr.mxu0 0.0
        %1461 = vmatpush1.msra.mxu0 0.0
        %1462 = vmatprep.subr.mxu0 0.0
        %1463 = vmatpush1.msra.mxu0 0.0
        %1464 = vmatprep.subr.mxu0 0.0
        %1465 = vmatpush1.msra.mxu0 0.0
        %1466 = vmatprep.subr.mxu0 0.0
        %1467 = vmatpush1.msra.mxu0 0.0
        %1468 = vmatprep.subr.mxu0 0.0
        %1469 = vmatpush1.msra.mxu0 0.0
        %1470 = vmatprep.subr.mxu0 0.0
        %1471 = vmatpush1.msra.mxu0 0.0
        %1472 = vmatprep.mubr.f32.mxu0 0.0
        %1473 = vmatmul.mubr.f32.gmra.mrb[0].mxu0 %v1406
        %v1474 = vpop.f32.mrb[0].mxu0
        %v1475 = vadd.f32 0.0, %v1474
        %v1476 = vpop.f32.mrb[0].mxu0
        %1477 = vdwg.mxu0
        %v1478 = vadd.f32 %v1403, %v1475
        %v1479 = vxor.u32 %v1478, 2147483648
        %v1480 = vmul.f32 %v1479, 1.442695
        %v1481 = vpow.pop %v1480
        %v1482 = vadd.f32 %v1481, 1.0
        %v1483 = vrcp.pop %v1482
        %v1484 = vmul.f32 1.0, %v1483
        %v1485 = vtanh.pop %v1478
        %v1486 = vld [vmem:[#allocation3] sm:$0xff]
        %1488 = vrot.lane.b32.xlu0 %v1486, 32
        %v1489 = vpop.permute.xlu0 %1488
        %v1491 = vmul.f32 %v1484, %v1489
        %1493 = vrot.lane.b32.xlu0 %v1485, 64
        %v1494 = vpop.permute.xlu0 %1493
        %v1496 = vmul.f32 %v1484, %v1494
        %1498 = vrot.lane.b32.xlu0 %v1496, 32
        %v1499 = vpop.permute.xlu0 %1498
        %v1501 = vadd.f32 %v1491, %v1499
        %v1502 = vtanh.pop %v1501
        %1504 = vrot.lane.b32.xlu0 %v1502, 64
        %v1505 = vpop.permute.xlu0 %1504
        %v1507 = vmul.f32 %v1484, %v1505
        %p1508 = scmp.lt.s32.totalorder %s1400, 16
        %s1509 = scalar_select %p1508, 1, 0
        %v1510 = vstv %s1509
        %vm1511 = vcmp.eq.s32.totalorder %v1510, 1
        %1512 = vrot.lane.b32.xlu0 %v1404, 96
        %v1513 = vpop.permute.xlu0 %1512
        %v1515 = vsel %vm1511, %v1507, %v1513
        %1517 = vrot.lane.b32.xlu0 %v1515, 32
        %v1518 = vpop.permute.xlu0 %1517
        %1520 = vst.msk [vmem:[#allocation2] sm:$0xff] %vm316, %v1518
        %v1521 = vld [vmem:[#allocation3] sm:$0xff]
        %1523 = vrot.lane.b32.xlu0 %v1521, 32
        %v1524 = vpop.permute.xlu0 %1523
        %v1526 = vsel %vm1511, %v1501, %v1524
        %1528 = vrot.lane.b32.xlu0 %v1526, 96
        %v1529 = vpop.permute.xlu0 %1528
        %1531 = vst.msk [vmem:[#allocation3] sm:$0xff] %vm316, %v1529
        %p1532 = scmp.eq.s32.totalorder %s23, 1
        // Predicated region
        $region41: #{tpu_custom_call.1} parent=35 // pred_check
          %p1533 = pneg %p1532
        $region42: #{tpu_custom_call.1} parent=35 // pred_check_branch
          %1535 = sbr.rel (%p1533) target = $region44
        $region43: #{tpu_custom_call.1} parent=35 // pred_region
          %v1536 = vld [vmem:[#allocation2] sm:$0xff]
          %1537 = vst.msk [vmem:[%s263] sm:$0xff] %vm316, %v1536
        $region44: #{tpu_custom_call.1} parent=35 // pred_fallthru
          _
        %s1538 = sand.u32 %s150, 1
        %s1539 = scalar_lea.sflag [#allocation6], %s1538
        %s1540 = sand.u32 %s150, 1
        %s1541 = smul.addr %s1540, 8
        %s1542 = scalar_lea.vmem [#allocation5], %s1541
        // Predicated region
        $region45: #{tpu_custom_call.1} parent=35 // pred_check
          %p1543 = pneg %p160
        $region46: #{tpu_custom_call.1} parent=35 // pred_check_branch
          %1545 = sbr.rel (%p1543) target = $region48
        $region47: #{tpu_custom_call.1} parent=35 // pred_region
          %s1547 = ssub.s32 128, 128
          %1548 = vsyncadd %s1539, %s1547
          %s1549 = smul.addr %s22, 128
          %s1550 = scalar_lea.hbm %s4, %s1549
          %s1552 = sshll.u32 %s1542, 4
          %s1553 = int_to_ptr.vmem [resolvable:$true] %s1552
          %1555 = dma.vmem_to_hbm [thread:$0]  %s1553, 128, %s1550, %s1539
        $region48: #{tpu_custom_call.1} parent=35 // pred_fallthru
          _
      $region36: #{tpu_custom_call.1} parent=5 // pred_fallthru
        _
      %p1556 = scmp.le.s32.totalorder 2, %s13
      // Predicated region
      $region49: #{tpu_custom_call.1} parent=5 // pred_check
        %p1557 = pneg %p1556
      $region50: #{tpu_custom_call.1} parent=5 // pred_check_branch
        %1559 = sbr.rel (%p1557) target = $region52
      $region51: #{tpu_custom_call.1} parent=5 // pred_region
        %s1560 = ssub.s32 %s13, 2
        // Predicated region
        $region53: #{tpu_custom_call.1} parent=51 // pred_check
          %p1561 = pneg %p166
        $region54: #{tpu_custom_call.1} parent=51 // pred_check_branch
          %1563 = sbr.rel (%p1561) target = $region56
        $region55: #{tpu_custom_call.1} parent=51 // pred_region
          %s1564 = sand.u32 %s151, 1
          %s1565 = scalar_lea.sflag [#allocation6], %s1564
          %s1566 = sand.u32 %s151, 1
          %s1567 = smul.addr %s1566, 8
          %s1568 = scalar_lea.vmem [#allocation5], %s1567
          %1569 = dma.done %s1565, 128
        $region56: #{tpu_custom_call.1} parent=51 // pred_fallthru
          _
      $region52: #{tpu_custom_call.1} parent=5 // pred_fallthru
        _
    $region6: #{tpu_custom_call.1} parent=1 // loop_footer
      %s17 = sadd.s32 1, %s13
    $region7: #{tpu_custom_call.1} parent=1 // loop_footer_branch
      %12 = sbr.rel target = $region3
    $region8: #{tpu_custom_call.1} parent=1 // loop_exit
      _
    %1570 = vsyncpa [#allocation6], 1
    %s1571 = scalar_lea.sflag [#allocation6], 1
    %1572 = vsyncpa %s1571, 1

</llo_original>
